<compile_context>
chip_gen: v7x
topology: tpu7x:2x2x1
jax: 0.10.0
libtpu: 0.0.40
codegen_flags: <defaults>
</compile_context>

<pallas_src>
import functools

import jax
import jax.numpy as jnp
import numpy as np
from jax.experimental import pallas as pl
from jax.experimental.pallas import tpu as pltpu

Z_DIM = 200      # z_dim (fc input is 2 * Z_DIM = 400)
HIDDEN = 200     # fc output / fc2 input
LANE = 128


def _round_up(x, m):
    return (x + m - 1) // m * m


def attention_kernel(zt_ref, zc_ref, wt_ref, wc_ref, b1_ref, w2_ref, out_ref,
                     *, batch, tgt, ctx):
    # zt_ref: (batch*tgt, Zp) bf16 ; zc_ref: (batch*ctx, Zp) bf16
    # Split linear (bf16 MXU, f32 accumulation); fc bias folded into c_proj.
    t_proj = jnp.dot(zt_ref[...], wt_ref[...],
                     preferred_element_type=jnp.float32)       # (batch*tgt, Hp)
    c_proj = jnp.dot(zc_ref[...], wc_ref[...],
                     preferred_element_type=jnp.float32)       # (batch*ctx, Hp)
    c_proj = c_proj + b1_ref[...]

    hp = t_proj.shape[-1]
    hh = hp // 2
    w2_lo = w2_ref[:, :hh]                                     # (1, hh) f32
    w2_hi = w2_ref[:, hh:]                                     # (1, hh) f32

    # Split the leading (batch, rows) dim — layout no-op (major dims only).
    tp3 = t_proj.reshape(batch, tgt, hp)
    cp3 = c_proj.reshape(batch, ctx, hp)

    # batch per grid step is tiny (1 or 2): static unroll.
    for b in range(batch):
        h = jnp.maximum(tp3[b][:, None, :] + cp3[b][None, :, :], 0.0)  # (tgt, ctx, Hp)
        # dropout: identity (see TODO at top of file)

        # fc2 (bias dropped: softmax-invariant).  Pre-add the two 128-lane
        # halves on the VPU so the XLU cross-lane reduce sees half the lanes.
        hw = h[..., :hh] * w2_lo + h[..., hh:] * w2_hi         # (tgt, ctx, hh)
        logits = jnp.sum(hw, axis=-1)                          # (tgt, ctx)

        # softmax over the context axis (lanes)
        m = jnp.max(logits, axis=1, keepdims=True)
        e = jnp.exp(logits - m)
        p = e * pl.reciprocal(jnp.sum(e, axis=1, keepdims=True), approx=True)

        out_ref[pl.ds(b * tgt, tgt), :] = p.astype(out_ref.dtype)


def prepare_params(fc_w, fc_b, fc2_w, fc2_b):
    """One-time weight prep (hoisted out of the hot path).

    Splits the Linear(400,200) weight into target/context halves, transposes
    to (Z, H), zero-pads to lane-aligned (Zp, Hp), casts the matmul operands
    to bf16, and drops fc2's bias (constant logit shift: no-op under softmax).
    """
    del fc2_b
    H, Z2 = fc_w.shape
    Z = Z2 // 2
    Zp = _round_up(Z, LANE)
    Hp = _round_up(H, LANE)
    wt = (jnp.zeros((Zp, Hp), jnp.float32)
          .at[:Z, :H].set(fc_w[:, :Z].T).astype(jnp.bfloat16))
    wc = (jnp.zeros((Zp, Hp), jnp.float32)
          .at[:Z, :H].set(fc_w[:, Z:].T).astype(jnp.bfloat16))
    b1 = jnp.zeros((1, Hp), jnp.float32).at[:, :H].set(fc_b)
    w2 = jnp.zeros((1, Hp), jnp.float32).at[:, :H].set(fc2_w[0])
    return wt, wc, b1, w2


def _pick_num_blocks(batch):
    """grid=(1,) (batch folded into the matmul M dim) on single-TC v5e/v6e;
    grid=(2,) + "parallel" on v7x so the two halves land one per TensorCore."""
    try:
        kind = jax.devices()[0].device_kind.lower()
    except Exception:
        return 1
    if "v7" in kind and batch % 2 == 0:
        return 2
    return 1


@functools.partial(jax.jit, static_argnames=("num_blocks",))
def attention_net(z_context, z_target, wt, wc, b1, w2, *, num_blocks=1):
    """z_context: (B, C, Z), z_target: (B, T, Z); wt/wc/b1/w2 from prepare_params."""
    B, C, Z = z_context.shape
    _, T, _ = z_target.shape
    Zp, Hp = wt.shape

    # Per-call activation prep only (cheap pad + bf16 cast; fused under jit).
    ztp = jnp.pad(z_target, ((0, 0), (0, 0), (0, Zp - Z))
                  ).astype(jnp.bfloat16).reshape(B * T, Zp)
    zcp = jnp.pad(z_context, ((0, 0), (0, 0), (0, Zp - Z))
                  ).astype(jnp.bfloat16).reshape(B * C, Zp)

    bb = B // num_blocks        # batches per grid step

    grid_spec = pltpu.PrefetchScalarGridSpec(
        num_scalar_prefetch=0,
        grid=(num_blocks,),
        in_specs=[
            pl.BlockSpec((bb * T, Zp), lambda i: (i, 0)),   # z_target rows
            pl.BlockSpec((bb * C, Zp), lambda i: (i, 0)),   # z_context rows
            pl.BlockSpec((Zp, Hp),     lambda i: (0, 0)),   # Wt (DMA'd once)
            pl.BlockSpec((Zp, Hp),     lambda i: (0, 0)),   # Wc
            pl.BlockSpec((1, Hp),      lambda i: (0, 0)),   # fc bias (folded)
            pl.BlockSpec((1, Hp),      lambda i: (0, 0)),   # fc2 weight row
        ],
        out_specs=pl.BlockSpec((bb * T, C), lambda i: (i, 0)),
    )

    p_tc = pl.pallas_call(
        functools.partial(attention_kernel, batch=bb, tgt=T, ctx=C),
        out_shape=jax.ShapeDtypeStruct((B * T, C), jnp.float32),
        grid_spec=grid_spec,
        compiler_params=pltpu.CompilerParams(
            dimension_semantics=("parallel",)),   # batch blocks across v7x TCs
    )(ztp, zcp, wt, wc, b1, w2)

    # (B*T, C) -> (B, T, C) -> (B, C, T): free wrapper permute (no in-kernel XLU).
    return jnp.transpose(p_tc.reshape(B, T, C), (0, 2, 1))


def reference_forward(z_context, z_target, fc_w, fc_b, fc2_w, fc2_b):
    # Pure-JAX f32 reference with the torch module's math (dropout = identity).
    Z = z_context.shape[-1]
    tp = jnp.einsum("btz,hz->bth", z_target, fc_w[:, :Z])
    cp = jnp.einsum("bcz,hz->bch", z_context, fc_w[:, Z:])
    h = jax.nn.relu(tp[:, :, None, :] + cp[:, None, :, :] + fc_b)
    logits = jnp.einsum("btch,h->btc", h, fc2_w[0]) + fc2_b[0]
    p = jax.nn.softmax(logits, axis=-1)            # softmax over context stations
    return jnp.transpose(p, (0, 2, 1))             # (B, C, T)


if __name__ == "__main__":
    key = jax.random.PRNGKey(0)
    k_ctx, k_tgt, k_w1, k_b1, k_w2, k_b2 = jax.random.split(key, 6)

    B, T, C = 2, 8, 16                             # batch, targets, context stations

    z_context = jax.random.normal(k_ctx, (B, C, Z_DIM), dtype=jnp.float32)
    z_target = jax.random.normal(k_tgt, (B, T, Z_DIM), dtype=jnp.float32)

    # nn.Linear(400, 200): weight (200, 400), bias (200,)  -- deterministic init
    bound1 = 1.0 / np.sqrt(2 * Z_DIM)
    fc_w = jax.random.uniform(k_w1, (HIDDEN, 2 * Z_DIM), jnp.float32,
                              -bound1, bound1)
    fc_b = jax.random.uniform(k_b1, (HIDDEN,), jnp.float32, -bound1, bound1)

    # nn.Linear(200, 1): weight (1, 200), bias (1,)
    bound2 = 1.0 / np.sqrt(HIDDEN)
    fc2_w = jax.random.uniform(k_w2, (1, HIDDEN), jnp.float32, -bound2, bound2)
    fc2_b = jax.random.uniform(k_b2, (1,), jnp.float32, -bound2, bound2)

    # One-time weight prep, hoisted out of the per-call hot path.
    params = prepare_params(fc_w, fc_b, fc2_w, fc2_b)
    num_blocks = _pick_num_blocks(B)

    out = jax.block_until_ready(
        attention_net(z_context, z_target, *params, num_blocks=num_blocks))
    ref = jax.block_until_ready(
        reference_forward(z_context, z_target, fc_w, fc_b, fc2_w, fc2_b))

    assert out.shape == (B, C, T), out.shape
    # Tolerance relaxed for bf16 matmul operands + approx reciprocal.
    np.testing.assert_allclose(np.asarray(out), np.asarray(ref),
                               rtol=2e-2, atol=5e-3)
    print("KERNEL_OK")
</pallas_src>

<mosaic_0001>
module attributes {stable_mosaic.version = 11 : i64} {
  func.func @attention_kernel(%arg0: i32, %arg1: memref<16x256xbf16, #tpu.memory_space<vmem>>, %arg2: memref<32x256xbf16, #tpu.memory_space<vmem>>, %arg3: memref<256x256xbf16, #tpu.memory_space<vmem>>, %arg4: memref<256x256xbf16, #tpu.memory_space<vmem>>, %arg5: memref<1x256xf32, #tpu.memory_space<vmem>>, %arg6: memref<1x256xf32, #tpu.memory_space<vmem>>, %arg7: memref<16x16xf32, #tpu.memory_space<vmem>>) attributes {dimension_semantics = [#tpu.dimension_semantics<parallel>], iteration_bounds = array<i64: 1>, scalar_prefetch = 0 : i64, scratch_operands = 0 : i64, tpu.core_type = #tpu.core_type<tc>, window_params = [{transform_indices = @transform_0, window_bounds = array<i64: 16, 256>}, {transform_indices = @transform_1, window_bounds = array<i64: 32, 256>}, {pipeline_mode = #tpu.pipeline_mode<synchronous>, transform_indices = @transform_2, window_bounds = array<i64: 256, 256>}, {pipeline_mode = #tpu.pipeline_mode<synchronous>, transform_indices = @transform_3, window_bounds = array<i64: 256, 256>}, {pipeline_mode = #tpu.pipeline_mode<synchronous>, transform_indices = @transform_4, window_bounds = array<i64: 1, 256>}, {pipeline_mode = #tpu.pipeline_mode<synchronous>, transform_indices = @transform_5, window_bounds = array<i64: 1, 256>}, {transform_indices = @transform_6, window_bounds = array<i64: 16, 16>}]} {
    %c0 = arith.constant 0 : index
    %c0_0 = arith.constant 0 : index
    %0 = vector.load %arg1[%c0, %c0_0] : memref<16x256xbf16, #tpu.memory_space<vmem>>, vector<16x256xbf16>
    %c0_1 = arith.constant 0 : index
    %c0_2 = arith.constant 0 : index
    %1 = vector.load %arg3[%c0_1, %c0_2] : memref<256x256xbf16, #tpu.memory_space<vmem>>, vector<256x256xbf16>
    %cst = arith.constant dense<0.000000e+00> : vector<16x256xf32>
    %2 = tpu.matmul %0, %1, %cst {dimension_numbers = #tpu.dot_dimension_numbers<[1], [0], [0], [1], [0, 0, 1, 1], [], []>} : vector<16x256xbf16>, vector<256x256xbf16>, vector<16x256xf32> -> vector<16x256xf32>
    %c0_3 = arith.constant 0 : index
    %c0_4 = arith.constant 0 : index
    %3 = vector.load %arg2[%c0_3, %c0_4] : memref<32x256xbf16, #tpu.memory_space<vmem>>, vector<32x256xbf16>
    %c0_5 = arith.constant 0 : index
    %c0_6 = arith.constant 0 : index
    %4 = vector.load %arg4[%c0_5, %c0_6] : memref<256x256xbf16, #tpu.memory_space<vmem>>, vector<256x256xbf16>
    %cst_7 = arith.constant dense<0.000000e+00> : vector<32x256xf32>
    %5 = tpu.matmul %3, %4, %cst_7 {dimension_numbers = #tpu.dot_dimension_numbers<[1], [0], [0], [1], [0, 0, 1, 1], [], []>} : vector<32x256xbf16>, vector<256x256xbf16>, vector<32x256xf32> -> vector<32x256xf32>
    %c0_8 = arith.constant 0 : index
    %c0_9 = arith.constant 0 : index
    %6 = vector.load %arg5[%c0_8, %c0_9] : memref<1x256xf32, #tpu.memory_space<vmem>>, vector<1x256xf32>
    %7 = vector.broadcast %6 : vector<1x256xf32> to vector<32x256xf32>
    %8 = arith.addf %5, %7 : vector<32x256xf32>
    %c0_10 = arith.constant 0 : index
    %c0_11 = arith.constant 0 : index
    %9 = vector.load %arg6[%c0_10, %c0_11] : memref<1x256xf32, #tpu.memory_space<vmem>>, vector<1x128xf32>
    %c0_12 = arith.constant 0 : index
    %c128 = arith.constant 128 : index
    %10 = vector.load %arg6[%c0_12, %c128] : memref<1x256xf32, #tpu.memory_space<vmem>>, vector<1x128xf32>
    %11 = vector.shape_cast %2 : vector<16x256xf32> to vector<2x8x256xf32>
    %12 = vector.shape_cast %8 : vector<32x256xf32> to vector<2x16x256xf32>
    %13 = vector.extract_strided_slice %11 {offsets = [0, 0, 0], sizes = [1, 8, 256], strides = [1, 1, 1]} : vector<2x8x256xf32> to vector<1x8x256xf32>
    %14 = vector.shape_cast %13 : vector<1x8x256xf32> to vector<8x256xf32>
    %15 = vector.shape_cast %14 : vector<8x256xf32> to vector<8x1x256xf32>
    %16 = vector.extract_strided_slice %12 {offsets = [0, 0, 0], sizes = [1, 16, 256], strides = [1, 1, 1]} : vector<2x16x256xf32> to vector<1x16x256xf32>
    %17 = vector.shape_cast %16 : vector<1x16x256xf32> to vector<16x256xf32>
    %18 = vector.shape_cast %17 : vector<16x256xf32> to vector<1x16x256xf32>
    %19 = vector.broadcast %15 : vector<8x1x256xf32> to vector<8x16x256xf32>
    %20 = vector.broadcast %18 : vector<1x16x256xf32> to vector<8x16x256xf32>
    %21 = arith.addf %19, %20 : vector<8x16x256xf32>
    %cst_13 = arith.constant 0.000000e+00 : f32
    %22 = vector.broadcast %cst_13 : f32 to vector<8x16x256xf32>
    %23 = arith.maximumf %21, %22 : vector<8x16x256xf32>
    %24 = vector.extract_strided_slice %23 {offsets = [0, 0, 0], sizes = [8, 16, 128], strides = [1, 1, 1]} : vector<8x16x256xf32> to vector<8x16x128xf32>
    %25 = vector.shape_cast %9 : vector<1x128xf32> to vector<1x1x128xf32>
    %26 = vector.broadcast %25 : vector<1x1x128xf32> to vector<8x16x128xf32>
    %27 = arith.mulf %24, %26 : vector<8x16x128xf32>
    %28 = vector.extract_strided_slice %23 {offsets = [0, 0, 128], sizes = [8, 16, 128], strides = [1, 1, 1]} : vector<8x16x256xf32> to vector<8x16x128xf32>
    %29 = vector.shape_cast %10 : vector<1x128xf32> to vector<1x1x128xf32>
    %30 = vector.broadcast %29 : vector<1x1x128xf32> to vector<8x16x128xf32>
    %31 = arith.mulf %28, %30 : vector<8x16x128xf32>
    %32 = arith.addf %27, %31 : vector<8x16x128xf32>
    %cst_14 = arith.constant dense<0.000000e+00> : vector<8x16xf32>
    %33 = vector.multi_reduction <add>, %32, %cst_14 [2] : vector<8x16x128xf32> to vector<8x16xf32>
    %cst_15 = arith.constant dense<0xFF800000> : vector<8xf32>
    %34 = vector.multi_reduction <maximumf>, %33, %cst_15 [1] : vector<8x16xf32> to vector<8xf32>
    %35 = vector.shape_cast %34 : vector<8xf32> to vector<8x1xf32>
    %36 = vector.broadcast %35 : vector<8x1xf32> to vector<8x16xf32>
    %37 = arith.subf %33, %36 : vector<8x16xf32>
    %38 = math.exp %37 : vector<8x16xf32>
    %cst_16 = arith.constant dense<0.000000e+00> : vector<8xf32>
    %39 = vector.multi_reduction <add>, %38, %cst_16 [1] : vector<8x16xf32> to vector<8xf32>
    %40 = vector.shape_cast %39 : vector<8xf32> to vector<8x1xf32>
    %41 = tpu.reciprocal %40 {approx = true} : vector<8x1xf32> -> vector<8x1xf32>
    %42 = vector.broadcast %41 : vector<8x1xf32> to vector<8x16xf32>
    %43 = arith.mulf %38, %42 : vector<8x16xf32>
    %c0_17 = arith.constant 0 : index
    %c0_18 = arith.constant 0 : index
    %44 = vector.load %arg7[%c0_17, %c0_18] : memref<16x16xf32, #tpu.memory_space<vmem>>, vector<8x16xf32>
    tpu.vector_store %arg7[%c0_17, %c0_18], %43 {strides = array<i32>} : memref<16x16xf32, #tpu.memory_space<vmem>>, vector<8x16xf32>,
    %45 = vector.extract_strided_slice %11 {offsets = [1, 0, 0], sizes = [1, 8, 256], strides = [1, 1, 1]} : vector<2x8x256xf32> to vector<1x8x256xf32>
    %46 = vector.shape_cast %45 : vector<1x8x256xf32> to vector<8x256xf32>
    %47 = vector.shape_cast %46 : vector<8x256xf32> to vector<8x1x256xf32>
    %48 = vector.extract_strided_slice %12 {offsets = [1, 0, 0], sizes = [1, 16, 256], strides = [1, 1, 1]} : vector<2x16x256xf32> to vector<1x16x256xf32>
    %49 = vector.shape_cast %48 : vector<1x16x256xf32> to vector<16x256xf32>
    %50 = vector.shape_cast %49 : vector<16x256xf32> to vector<1x16x256xf32>
    %51 = vector.broadcast %47 : vector<8x1x256xf32> to vector<8x16x256xf32>
    %52 = vector.broadcast %50 : vector<1x16x256xf32> to vector<8x16x256xf32>
    %53 = arith.addf %51, %52 : vector<8x16x256xf32>
    %cst_19 = arith.constant 0.000000e+00 : f32
    %54 = vector.broadcast %cst_19 : f32 to vector<8x16x256xf32>
    %55 = arith.maximumf %53, %54 : vector<8x16x256xf32>
    %56 = vector.extract_strided_slice %55 {offsets = [0, 0, 0], sizes = [8, 16, 128], strides = [1, 1, 1]} : vector<8x16x256xf32> to vector<8x16x128xf32>
    %57 = vector.shape_cast %9 : vector<1x128xf32> to vector<1x1x128xf32>
    %58 = vector.broadcast %57 : vector<1x1x128xf32> to vector<8x16x128xf32>
    %59 = arith.mulf %56, %58 : vector<8x16x128xf32>
    %60 = vector.extract_strided_slice %55 {offsets = [0, 0, 128], sizes = [8, 16, 128], strides = [1, 1, 1]} : vector<8x16x256xf32> to vector<8x16x128xf32>
    %61 = vector.shape_cast %10 : vector<1x128xf32> to vector<1x1x128xf32>
    %62 = vector.broadcast %61 : vector<1x1x128xf32> to vector<8x16x128xf32>
    %63 = arith.mulf %60, %62 : vector<8x16x128xf32>
    %64 = arith.addf %59, %63 : vector<8x16x128xf32>
    %cst_20 = arith.constant dense<0.000000e+00> : vector<8x16xf32>
    %65 = vector.multi_reduction <add>, %64, %cst_20 [2] : vector<8x16x128xf32> to vector<8x16xf32>
    %cst_21 = arith.constant dense<0xFF800000> : vector<8xf32>
    %66 = vector.multi_reduction <maximumf>, %65, %cst_21 [1] : vector<8x16xf32> to vector<8xf32>
    %67 = vector.shape_cast %66 : vector<8xf32> to vector<8x1xf32>
    %68 = vector.broadcast %67 : vector<8x1xf32> to vector<8x16xf32>
    %69 = arith.subf %65, %68 : vector<8x16xf32>
    %70 = math.exp %69 : vector<8x16xf32>
    %cst_22 = arith.constant dense<0.000000e+00> : vector<8xf32>
    %71 = vector.multi_reduction <add>, %70, %cst_22 [1] : vector<8x16xf32> to vector<8xf32>
    %72 = vector.shape_cast %71 : vector<8xf32> to vector<8x1xf32>
    %73 = tpu.reciprocal %72 {approx = true} : vector<8x1xf32> -> vector<8x1xf32>
    %74 = vector.broadcast %73 : vector<8x1xf32> to vector<8x16xf32>
    %75 = arith.mulf %70, %74 : vector<8x16xf32>
    %c8 = arith.constant 8 : index
    %c0_23 = arith.constant 0 : index
    %76 = vector.load %arg7[%c8, %c0_23] : memref<16x16xf32, #tpu.memory_space<vmem>>, vector<8x16xf32>
    tpu.vector_store %arg7[%c8, %c0_23], %75 {strides = array<i32>} : memref<16x16xf32, #tpu.memory_space<vmem>>, vector<8x16xf32>,
    return
  }
  func.func @transform_0(%arg0: i32) -> (i32, i32) {
    %c0_i32 = arith.constant 0 : i32
    %c0_i32_0 = arith.constant 0 : i32
    return %arg0, %c0_i32 : i32, i32
  }
  func.func @transform_1(%arg0: i32) -> (i32, i32) {
    %c0_i32 = arith.constant 0 : i32
    %c0_i32_0 = arith.constant 0 : i32
    return %arg0, %c0_i32 : i32, i32
  }
  func.func @transform_2(%arg0: i32) -> (i32, i32) {
    %c0_i32 = arith.constant 0 : i32
    %c0_i32_0 = arith.constant 0 : i32
    %c0_i32_1 = arith.constant 0 : i32
    return %c0_i32, %c0_i32_0 : i32, i32
  }
  func.func @transform_3(%arg0: i32) -> (i32, i32) {
    %c0_i32 = arith.constant 0 : i32
    %c0_i32_0 = arith.constant 0 : i32
    %c0_i32_1 = arith.constant 0 : i32
    return %c0_i32, %c0_i32_0 : i32, i32
  }
  func.func @transform_4(%arg0: i32) -> (i32, i32) {
    %c0_i32 = arith.constant 0 : i32
    %c0_i32_0 = arith.constant 0 : i32
    %c0_i32_1 = arith.constant 0 : i32
    return %c0_i32, %c0_i32_0 : i32, i32
  }
  func.func @transform_5(%arg0: i32) -> (i32, i32) {
    %c0_i32 = arith.constant 0 : i32
    %c0_i32_0 = arith.constant 0 : i32
    %c0_i32_1 = arith.constant 0 : i32
    return %c0_i32, %c0_i32_0 : i32, i32
  }
  func.func @transform_6(%arg0: i32) -> (i32, i32) {
    %c0_i32 = arith.constant 0 : i32
    %c0_i32_0 = arith.constant 0 : i32
    return %arg0, %c0_i32 : i32, i32
  }
}

</mosaic_0001>

<llo_original>
// kernel: attention_net.1
$region0: #{attention_net.1}
  #allocation0 [shape = 'u32[]', space=smem, size = 0x4, offset = 0x4, fixed_abs, tag = 'smem constant byte address 0x4 - core index']
  #allocation1 [shape = 'u32[144,128]{1,0:T(1,128)}', space=vmem, size = 0x12000, scoped, tag = 'internal scratch']
  %s0 = inlined_call_operand.vmem [shape: bf16[16,256], index: 0, kind: input, shape index: {}]
  %s1 = inlined_call_operand.vmem [shape: bf16[32,256], index: 1, kind: input, shape index: {}]
  %s2 = inlined_call_operand.hbm [shape: bf16[256,256], index: 2, kind: input, shape index: {}]
  %s3 = inlined_call_operand.hbm [shape: bf16[256,256], index: 3, kind: input, shape index: {}]
  %s4 = inlined_call_operand.vmem [shape: f32[1,256], index: 4, kind: input, shape index: {}]
  %s5 = inlined_call_operand.vmem [shape: f32[1,256], index: 5, kind: input, shape index: {}]
  %s6 = inlined_call_operand.hbm [shape: f32[16,16], index: 6, kind: output, shape index: {}]
  %s7 = sld [smem:[#allocation0]]
  $region42: #{attention_net.1} parent=0
    _
  %s9 = ssub.s32 1, %s7
  %s10 = scalar_select 0, %s9, %s7
  $region1: #{attention_net.1} parent=0
    #allocation2 [shape = 'u8[131072]{0}', space=vmem, size = 0x20000, scoped, tag = 'input window, operand 2, single buffered']
    #allocation3 [shape = 's32[1]{0}', space=sflag, size = 0x4, scoped, tag = 'scoped memory for attention_net.1']
    #allocation4 [shape = 's32[1]{0}', space=sflag, size = 0x4, scoped, tag = 'scoped memory for attention_net.1']
    #allocation5 [shape = 'u8[131072]{0}', space=vmem, size = 0x20000, scoped, tag = 'input window, operand 3, single buffered']
    #allocation6 [shape = 's32[1]{0}', space=sflag, size = 0x4, scoped, tag = 'scoped memory for attention_net.1']
    #allocation7 [shape = 'u8[8192]{0}', space=vmem, size = 0x2000, scoped, tag = 'output window, operand 0, single buffered']
    %11 = vsyncpa [#allocation3], 0
    %12 = vsyncpa [#allocation6], 0
    %13 = vsyncpa [#allocation4], 0
    // Predicated region
    $region2: #{attention_net.1} parent=1 // pred_check
      _
    $region3: #{attention_net.1} parent=1 // pred_check_branch
      %15 = sbr.rel (0) target = $region5
    $region4: #{attention_net.1} parent=1 // pred_region
      _
    $region5: #{attention_net.1} parent=1 // pred_fallthru
      _
    // Predicated region
    $region6: #{attention_net.1} parent=1 // pred_check
      _
    $region7: #{attention_net.1} parent=1 // pred_check_branch
      %17 = sbr.rel (0) target = $region9
    $region8: #{attention_net.1} parent=1 // pred_region
      _
    $region9: #{attention_net.1} parent=1 // pred_fallthru
      _
    // Predicated region
    $region10: #{attention_net.1} parent=1 // pred_check
      _
    $region11: #{attention_net.1} parent=1 // pred_check_branch
      %19 = sbr.rel (0) target = $region13
    $region12: #{attention_net.1} parent=1 // pred_region
      %s21 = ssub.s32 4096, 4096
      %22 = vsyncadd [#allocation3], %s21
      %s23 = sshll.u32 [#allocation2], 4
      %s24 = int_to_ptr.vmem [resolvable:$true] %s23
      %29 = dma.hbm_to_vmem [thread:$0]  %s2, 4096, %s24, [#allocation3], 128, 128, 8
    $region13: #{attention_net.1} parent=1 // pred_fallthru
      _
    // Predicated region
    $region14: #{attention_net.1} parent=1 // pred_check
      _
    $region15: #{attention_net.1} parent=1 // pred_check_branch
      %31 = sbr.rel (0) target = $region17
    $region16: #{attention_net.1} parent=1 // pred_region
      %s33 = ssub.s32 4096, 4096
      %34 = vsyncadd [#allocation6], %s33
      %s35 = sshll.u32 [#allocation5], 4
      %s36 = int_to_ptr.vmem [resolvable:$true] %s35
      %41 = dma.hbm_to_vmem [thread:$0]  %s3, 4096, %s36, [#allocation6], 128, 128, 8
    $region17: #{attention_net.1} parent=1 // pred_fallthru
      _
    // Predicated region
    $region18: #{attention_net.1} parent=1 // pred_check
      _
    $region19: #{attention_net.1} parent=1 // pred_check_branch
      %43 = sbr.rel (0) target = $region21
    $region20: #{attention_net.1} parent=1 // pred_region
      _
    $region21: #{attention_net.1} parent=1 // pred_fallthru
      _
    // Predicated region
    $region22: #{attention_net.1} parent=1 // pred_check
      _
    $region23: #{attention_net.1} parent=1 // pred_check_branch
      %45 = sbr.rel (0) target = $region25
    $region24: #{attention_net.1} parent=1 // pred_region
      _
    $region25: #{attention_net.1} parent=1 // pred_fallthru
      _
    // Predicated region
    $region26: #{attention_net.1} parent=1 // pred_check
      _
    $region27: #{attention_net.1} parent=1 // pred_check_branch
      %47 = sbr.rel (0) target = $region29
    $region28: #{attention_net.1} parent=1 // pred_region
      %48 = dma.done [#allocation3], 4096
    $region29: #{attention_net.1} parent=1 // pred_fallthru
      _
    // Predicated region
    $region30: #{attention_net.1} parent=1 // pred_check
      _
    $region31: #{attention_net.1} parent=1 // pred_check_branch
      %50 = sbr.rel (0) target = $region33
    $region32: #{attention_net.1} parent=1 // pred_region
      %51 = dma.done [#allocation6], 4096
    $region33: #{attention_net.1} parent=1 // pred_fallthru
      _
    %v52 = vld [vmem:[%s0] sm:$0xff]
    %v53 = vld [vmem:[%s0 + $0x8] sm:$0xff]
    %v54 = vld [vmem:[#allocation2] sm:$0xff]
    %v55 = vld [vmem:[#allocation2 + $0x8] sm:$0xff]
    %v56 = vld [vmem:[#allocation2 + $0x10] sm:$0xff]
    %v57 = vld [vmem:[#allocation2 + $0x18] sm:$0xff]
    %v58 = vld [vmem:[#allocation2 + $0x20] sm:$0xff]
    %v59 = vld [vmem:[#allocation2 + $0x28] sm:$0xff]
    %v60 = vld [vmem:[#allocation2 + $0x30] sm:$0xff]
    %v61 = vld [vmem:[#allocation2 + $0x38] sm:$0xff]
    %v62 = vld [vmem:[#allocation2 + $0x40] sm:$0xff]
    %v63 = vld [vmem:[#allocation2 + $0x48] sm:$0xff]
    %v64 = vld [vmem:[#allocation2 + $0x50] sm:$0xff]
    %v65 = vld [vmem:[#allocation2 + $0x58] sm:$0xff]
    %v66 = vld [vmem:[#allocation2 + $0x60] sm:$0xff]
    %v67 = vld [vmem:[#allocation2 + $0x68] sm:$0xff]
    %v68 = vld [vmem:[#allocation2 + $0x70] sm:$0xff]
    %v69 = vld [vmem:[#allocation2 + $0x78] sm:$0xff]
    %v70 = vld [vmem:[#allocation2 + $0x80] sm:$0xff]
    %v71 = vld [vmem:[#allocation2 + $0x88] sm:$0xff]
    %v72 = vld [vmem:[#allocation2 + $0x90] sm:$0xff]
    %v73 = vld [vmem:[#allocation2 + $0x98] sm:$0xff]
    %v74 = vld [vmem:[#allocation2 + $0xa0] sm:$0xff]
    %v75 = vld [vmem:[#allocation2 + $0xa8] sm:$0xff]
    %v76 = vld [vmem:[#allocation2 + $0xb0] sm:$0xff]
    %v77 = vld [vmem:[#allocation2 + $0xb8] sm:$0xff]
    %v78 = vld [vmem:[#allocation2 + $0xc0] sm:$0xff]
    %v79 = vld [vmem:[#allocation2 + $0xc8] sm:$0xff]
    %v80 = vld [vmem:[#allocation2 + $0xd0] sm:$0xff]
    %v81 = vld [vmem:[#allocation2 + $0xd8] sm:$0xff]
    %v82 = vld [vmem:[#allocation2 + $0xe0] sm:$0xff]
    %v83 = vld [vmem:[#allocation2 + $0xe8] sm:$0xff]
    %v84 = vld [vmem:[#allocation2 + $0xf0] sm:$0xff]
    %v85 = vld [vmem:[#allocation2 + $0xf8] sm:$0xff]
    %v88 = vunpack.c.l.b16 %v52
    %v89 = vunpack.c.h.b16 %v52
    %v90 = vunpack.c.l.b16 %v53
    %v91 = vunpack.c.h.b16 %v53
    %v92 = vpack.c.b16 %v90, %v88
    %v93 = vpack.c.b16 %v91, %v89
    %v128 = vunpack.c.l.b16 %v54
    %v129 = vunpack.c.h.b16 %v54
    %v130 = vunpack.c.l.b16 %v55
    %v131 = vunpack.c.h.b16 %v55
    %v132 = vunpack.c.l.b16 %v56
    %v133 = vunpack.c.h.b16 %v56
    %v134 = vunpack.c.l.b16 %v57
    %v135 = vunpack.c.h.b16 %v57
    %v136 = vunpack.c.l.b16 %v58
    %v137 = vunpack.c.h.b16 %v58
    %v138 = vunpack.c.l.b16 %v59
    %v139 = vunpack.c.h.b16 %v59
    %v140 = vunpack.c.l.b16 %v60
    %v141 = vunpack.c.h.b16 %v60
    %v142 = vunpack.c.l.b16 %v61
    %v143 = vunpack.c.h.b16 %v61
    %v144 = vunpack.c.l.b16 %v62
    %v145 = vunpack.c.h.b16 %v62
    %v146 = vunpack.c.l.b16 %v63
    %v147 = vunpack.c.h.b16 %v63
    %v148 = vunpack.c.l.b16 %v64
    %v149 = vunpack.c.h.b16 %v64
    %v150 = vunpack.c.l.b16 %v65
    %v151 = vunpack.c.h.b16 %v65
    %v152 = vunpack.c.l.b16 %v66
    %v153 = vunpack.c.h.b16 %v66
    %v154 = vunpack.c.l.b16 %v67
    %v155 = vunpack.c.h.b16 %v67
    %v156 = vunpack.c.l.b16 %v68
    %v157 = vunpack.c.h.b16 %v68
    %v158 = vunpack.c.l.b16 %v69
    %v159 = vunpack.c.h.b16 %v69
    %v160 = vunpack.c.l.b16 %v70
    %v161 = vunpack.c.h.b16 %v70
    %v162 = vunpack.c.l.b16 %v71
    %v163 = vunpack.c.h.b16 %v71
    %v164 = vunpack.c.l.b16 %v72
    %v165 = vunpack.c.h.b16 %v72
    %v166 = vunpack.c.l.b16 %v73
    %v167 = vunpack.c.h.b16 %v73
    %v168 = vunpack.c.l.b16 %v74
    %v169 = vunpack.c.h.b16 %v74
    %v170 = vunpack.c.l.b16 %v75
    %v171 = vunpack.c.h.b16 %v75
    %v172 = vunpack.c.l.b16 %v76
    %v173 = vunpack.c.h.b16 %v76
    %v174 = vunpack.c.l.b16 %v77
    %v175 = vunpack.c.h.b16 %v77
    %v176 = vunpack.c.l.b16 %v78
    %v177 = vunpack.c.h.b16 %v78
    %v178 = vunpack.c.l.b16 %v79
    %v179 = vunpack.c.h.b16 %v79
    %v180 = vunpack.c.l.b16 %v80
    %v181 = vunpack.c.h.b16 %v80
    %v182 = vunpack.c.l.b16 %v81
    %v183 = vunpack.c.h.b16 %v81
    %v184 = vunpack.c.l.b16 %v82
    %v185 = vunpack.c.h.b16 %v82
    %v186 = vunpack.c.l.b16 %v83
    %v187 = vunpack.c.h.b16 %v83
    %v188 = vunpack.c.l.b16 %v84
    %v189 = vunpack.c.h.b16 %v84
    %v190 = vunpack.c.l.b16 %v85
    %v191 = vunpack.c.h.b16 %v85
    %v192 = vpack.c.b16 %v130, %v128
    %v193 = vpack.c.b16 %v131, %v129
    %v194 = vpack.c.b16 %v134, %v132
    %v195 = vpack.c.b16 %v135, %v133
    %v196 = vpack.c.b16 %v138, %v136
    %v197 = vpack.c.b16 %v139, %v137
    %v198 = vpack.c.b16 %v142, %v140
    %v199 = vpack.c.b16 %v143, %v141
    %v200 = vpack.c.b16 %v146, %v144
    %v201 = vpack.c.b16 %v147, %v145
    %v202 = vpack.c.b16 %v150, %v148
    %v203 = vpack.c.b16 %v151, %v149
    %v204 = vpack.c.b16 %v154, %v152
    %v205 = vpack.c.b16 %v155, %v153
    %v206 = vpack.c.b16 %v158, %v156
    %v207 = vpack.c.b16 %v159, %v157
    %v208 = vpack.c.b16 %v162, %v160
    %v209 = vpack.c.b16 %v163, %v161
    %v210 = vpack.c.b16 %v166, %v164
    %v211 = vpack.c.b16 %v167, %v165
    %v212 = vpack.c.b16 %v170, %v168
    %v213 = vpack.c.b16 %v171, %v169
    %v214 = vpack.c.b16 %v174, %v172
    %v215 = vpack.c.b16 %v175, %v173
    %v216 = vpack.c.b16 %v178, %v176
    %v217 = vpack.c.b16 %v179, %v177
    %v218 = vpack.c.b16 %v182, %v180
    %v219 = vpack.c.b16 %v183, %v181
    %v220 = vpack.c.b16 %v186, %v184
    %v221 = vpack.c.b16 %v187, %v185
    %v222 = vpack.c.b16 %v190, %v188
    %v223 = vpack.c.b16 %v191, %v189
    %256 = vmatprep.subr.bf16.mxu0 %v193
    %257 = vmatpush1.bf16.msra.mxu0 %v192
    %258 = vmatprep.subr.bf16.mxu0 %v195
    %259 = vmatpush1.bf16.msra.mxu0 %v194
    %260 = vmatprep.subr.bf16.mxu0 %v197
    %261 = vmatpush1.bf16.msra.mxu0 %v196
    %262 = vmatprep.subr.bf16.mxu0 %v199
    %263 = vmatpush1.bf16.msra.mxu0 %v198
    %264 = vmatprep.subr.bf16.mxu0 %v201
    %265 = vmatpush1.bf16.msra.mxu0 %v200
    %266 = vmatprep.subr.bf16.mxu0 %v203
    %267 = vmatpush1.bf16.msra.mxu0 %v202
    %268 = vmatprep.subr.bf16.mxu0 %v205
    %269 = vmatpush1.bf16.msra.mxu0 %v204
    %270 = vmatprep.subr.bf16.mxu0 %v207
    %271 = vmatpush1.bf16.msra.mxu0 %v206
    %272 = vmatprep.subr.bf16.mxu0 %v209
    %273 = vmatpush1.bf16.msra.mxu0 %v208
    %274 = vmatprep.subr.bf16.mxu0 %v211
    %275 = vmatpush1.bf16.msra.mxu0 %v210
    %276 = vmatprep.subr.bf16.mxu0 %v213
    %277 = vmatpush1.bf16.msra.mxu0 %v212
    %278 = vmatprep.subr.bf16.mxu0 %v215
    %279 = vmatpush1.bf16.msra.mxu0 %v214
    %280 = vmatprep.subr.bf16.mxu0 %v217
    %281 = vmatpush1.bf16.msra.mxu0 %v216
    %282 = vmatprep.subr.bf16.mxu0 %v219
    %283 = vmatpush1.bf16.msra.mxu0 %v218
    %284 = vmatprep.subr.bf16.mxu0 %v221
    %285 = vmatpush1.bf16.msra.mxu0 %v220
    %286 = vmatprep.subr.bf16.mxu0 %v223
    %287 = vmatpush1.bf16.msra.mxu0 %v222
    %288 = vmatprep.mubr.bf16.mxu0 %v93
    %289 = vmatmul.mubr.bf16.gmra.mrb[0].mxu0 %v92
    %v290 = vpop.f32.mrb[0].mxu0
    %v291 = vadd.f32 0.0, %v290
    %v292 = vpop.f32.mrb[0].mxu0
    %v293 = vadd.f32 0.0, %v292
    %v294 = vpop.f32.mrb[0].mxu0
    %v295 = vadd.f32 0.0, %v294
    %v296 = vpop.f32.mrb[0].mxu0
    %v297 = vadd.f32 0.0, %v296
    %298 = vdwg.mxu0
    %v299 = vld [vmem:[%s1] sm:$0xff]
    %v300 = vld [vmem:[%s1 + $0x8] sm:$0xff]
    %v301 = vld [vmem:[%s1 + $0x10] sm:$0xff]
    %v302 = vld [vmem:[%s1 + $0x18] sm:$0xff]
    %v303 = vld [vmem:[#allocation5] sm:$0xff]
    %v304 = vld [vmem:[#allocation5 + $0x8] sm:$0xff]
    %v305 = vld [vmem:[#allocation5 + $0x10] sm:$0xff]
    %v306 = vld [vmem:[#allocation5 + $0x18] sm:$0xff]
    %v307 = vld [vmem:[#allocation5 + $0x20] sm:$0xff]
    %v308 = vld [vmem:[#allocation5 + $0x28] sm:$0xff]
    %v309 = vld [vmem:[#allocation5 + $0x30] sm:$0xff]
    %v310 = vld [vmem:[#allocation5 + $0x38] sm:$0xff]
    %v311 = vld [vmem:[#allocation5 + $0x40] sm:$0xff]
    %v312 = vld [vmem:[#allocation5 + $0x48] sm:$0xff]
    %v313 = vld [vmem:[#allocation5 + $0x50] sm:$0xff]
    %v314 = vld [vmem:[#allocation5 + $0x58] sm:$0xff]
    %v315 = vld [vmem:[#allocation5 + $0x60] sm:$0xff]
    %v316 = vld [vmem:[#allocation5 + $0x68] sm:$0xff]
    %v317 = vld [vmem:[#allocation5 + $0x70] sm:$0xff]
    %v318 = vld [vmem:[#allocation5 + $0x78] sm:$0xff]
    %v319 = vld [vmem:[#allocation5 + $0x80] sm:$0xff]
    %v320 = vld [vmem:[#allocation5 + $0x88] sm:$0xff]
    %v321 = vld [vmem:[#allocation5 + $0x90] sm:$0xff]
    %v322 = vld [vmem:[#allocation5 + $0x98] sm:$0xff]
    %v323 = vld [vmem:[#allocation5 + $0xa0] sm:$0xff]
    %v324 = vld [vmem:[#allocation5 + $0xa8] sm:$0xff]
    %v325 = vld [vmem:[#allocation5 + $0xb0] sm:$0xff]
    %v326 = vld [vmem:[#allocation5 + $0xb8] sm:$0xff]
    %v327 = vld [vmem:[#allocation5 + $0xc0] sm:$0xff]
    %v328 = vld [vmem:[#allocation5 + $0xc8] sm:$0xff]
    %v329 = vld [vmem:[#allocation5 + $0xd0] sm:$0xff]
    %v330 = vld [vmem:[#allocation5 + $0xd8] sm:$0xff]
    %v331 = vld [vmem:[#allocation5 + $0xe0] sm:$0xff]
    %v332 = vld [vmem:[#allocation5 + $0xe8] sm:$0xff]
    %v333 = vld [vmem:[#allocation5 + $0xf0] sm:$0xff]
    %v334 = vld [vmem:[#allocation5 + $0xf8] sm:$0xff]
    %v335 = vld [vmem:[%s4] sm:$0x3]
    %v337 = vlaneseq
    %v338 = vshrl.u32 %v337, 7
    %v339 = vsub.s32 0, %v338
    %v340 = vrot.slane %v335, %v339
    %v341 = vlaneseq
    %v342 = vshrl.u32 %v341, 7
    %v343 = vsub.s32 1, %v342
    %v344 = vrot.slane %v335, %v343
    %v351 = vunpack.c.l.b16 %v299
    %v352 = vunpack.c.h.b16 %v299
    %v353 = vunpack.c.l.b16 %v300
    %v354 = vunpack.c.h.b16 %v300
    %v355 = vunpack.c.l.b16 %v301
    %v356 = vunpack.c.h.b16 %v301
    %v357 = vunpack.c.l.b16 %v302
    %v358 = vunpack.c.h.b16 %v302
    %v359 = vpack.c.b16 %v353, %v351
    %v360 = vpack.c.b16 %v354, %v352
    %v361 = vpack.c.b16 %v357, %v355
    %v362 = vpack.c.b16 %v358, %v356
    %v399 = vunpack.c.l.b16 %v303
    %v400 = vunpack.c.h.b16 %v303
    %v401 = vunpack.c.l.b16 %v304
    %v402 = vunpack.c.h.b16 %v304
    %v403 = vunpack.c.l.b16 %v305
    %v404 = vunpack.c.h.b16 %v305
    %v405 = vunpack.c.l.b16 %v306
    %v406 = vunpack.c.h.b16 %v306
    %v407 = vunpack.c.l.b16 %v307
    %v408 = vunpack.c.h.b16 %v307
    %v409 = vunpack.c.l.b16 %v308
    %v410 = vunpack.c.h.b16 %v308
    %v411 = vunpack.c.l.b16 %v309
    %v412 = vunpack.c.h.b16 %v309
    %v413 = vunpack.c.l.b16 %v310
    %v414 = vunpack.c.h.b16 %v310
    %v415 = vunpack.c.l.b16 %v311
    %v416 = vunpack.c.h.b16 %v311
    %v417 = vunpack.c.l.b16 %v312
    %v418 = vunpack.c.h.b16 %v312
    %v419 = vunpack.c.l.b16 %v313
    %v420 = vunpack.c.h.b16 %v313
    %v421 = vunpack.c.l.b16 %v314
    %v422 = vunpack.c.h.b16 %v314
    %v423 = vunpack.c.l.b16 %v315
    %v424 = vunpack.c.h.b16 %v315
    %v425 = vunpack.c.l.b16 %v316
    %v426 = vunpack.c.h.b16 %v316
    %v427 = vunpack.c.l.b16 %v317
    %v428 = vunpack.c.h.b16 %v317
    %v429 = vunpack.c.l.b16 %v318
    %v430 = vunpack.c.h.b16 %v318
    %v431 = vunpack.c.l.b16 %v319
    %v432 = vunpack.c.h.b16 %v319
    %v433 = vunpack.c.l.b16 %v320
    %v434 = vunpack.c.h.b16 %v320
    %v435 = vunpack.c.l.b16 %v321
    %v436 = vunpack.c.h.b16 %v321
    %v437 = vunpack.c.l.b16 %v322
    %v438 = vunpack.c.h.b16 %v322
    %v439 = vunpack.c.l.b16 %v323
    %v440 = vunpack.c.h.b16 %v323
    %v441 = vunpack.c.l.b16 %v324
    %v442 = vunpack.c.h.b16 %v324
    %v443 = vunpack.c.l.b16 %v325
    %v444 = vunpack.c.h.b16 %v325
    %v445 = vunpack.c.l.b16 %v326
    %v446 = vunpack.c.h.b16 %v326
    %v447 = vunpack.c.l.b16 %v327
    %v448 = vunpack.c.h.b16 %v327
    %v449 = vunpack.c.l.b16 %v328
    %v450 = vunpack.c.h.b16 %v328
    %v451 = vunpack.c.l.b16 %v329
    %v452 = vunpack.c.h.b16 %v329
    %v453 = vunpack.c.l.b16 %v330
    %v454 = vunpack.c.h.b16 %v330
    %v455 = vunpack.c.l.b16 %v331
    %v456 = vunpack.c.h.b16 %v331
    %v457 = vunpack.c.l.b16 %v332
    %v458 = vunpack.c.h.b16 %v332
    %v459 = vunpack.c.l.b16 %v333
    %v460 = vunpack.c.h.b16 %v333
    %v461 = vunpack.c.l.b16 %v334
    %v462 = vunpack.c.h.b16 %v334
    %v463 = vpack.c.b16 %v401, %v399
    %v464 = vpack.c.b16 %v402, %v400
    %v465 = vpack.c.b16 %v405, %v403
    %v466 = vpack.c.b16 %v406, %v404
    %v467 = vpack.c.b16 %v409, %v407
    %v468 = vpack.c.b16 %v410, %v408
    %v469 = vpack.c.b16 %v413, %v411
    %v470 = vpack.c.b16 %v414, %v412
    %v471 = vpack.c.b16 %v417, %v415
    %v472 = vpack.c.b16 %v418, %v416
    %v473 = vpack.c.b16 %v421, %v419
    %v474 = vpack.c.b16 %v422, %v420
    %v475 = vpack.c.b16 %v425, %v423
    %v476 = vpack.c.b16 %v426, %v424
    %v477 = vpack.c.b16 %v429, %v427
    %v478 = vpack.c.b16 %v430, %v428
    %v479 = vpack.c.b16 %v433, %v431
    %v480 = vpack.c.b16 %v434, %v432
    %v481 = vpack.c.b16 %v437, %v435
    %v482 = vpack.c.b16 %v438, %v436
    %v483 = vpack.c.b16 %v441, %v439
    %v484 = vpack.c.b16 %v442, %v440
    %v485 = vpack.c.b16 %v445, %v443
    %v486 = vpack.c.b16 %v446, %v444
    %v487 = vpack.c.b16 %v449, %v447
    %v488 = vpack.c.b16 %v450, %v448
    %v489 = vpack.c.b16 %v453, %v451
    %v490 = vpack.c.b16 %v454, %v452
    %v491 = vpack.c.b16 %v457, %v455
    %v492 = vpack.c.b16 %v458, %v456
    %v493 = vpack.c.b16 %v461, %v459
    %v494 = vpack.c.b16 %v462, %v460
    %527 = vmatprep.subr.bf16.mxu0 %v464
    %528 = vmatpush1.bf16.msra.mxu0 %v463
    %529 = vmatprep.subr.bf16.mxu0 %v466
    %530 = vmatpush1.bf16.msra.mxu0 %v465
    %531 = vmatprep.subr.bf16.mxu0 %v468
    %532 = vmatpush1.bf16.msra.mxu0 %v467
    %533 = vmatprep.subr.bf16.mxu0 %v470
    %534 = vmatpush1.bf16.msra.mxu0 %v469
    %535 = vmatprep.subr.bf16.mxu0 %v472
    %536 = vmatpush1.bf16.msra.mxu0 %v471
    %537 = vmatprep.subr.bf16.mxu0 %v474
    %538 = vmatpush1.bf16.msra.mxu0 %v473
    %539 = vmatprep.subr.bf16.mxu0 %v476
    %540 = vmatpush1.bf16.msra.mxu0 %v475
    %541 = vmatprep.subr.bf16.mxu0 %v478
    %542 = vmatpush1.bf16.msra.mxu0 %v477
    %543 = vmatprep.subr.bf16.mxu0 %v480
    %544 = vmatpush1.bf16.msra.mxu0 %v479
    %545 = vmatprep.subr.bf16.mxu0 %v482
    %546 = vmatpush1.bf16.msra.mxu0 %v481
    %547 = vmatprep.subr.bf16.mxu0 %v484
    %548 = vmatpush1.bf16.msra.mxu0 %v483
    %549 = vmatprep.subr.bf16.mxu0 %v486
    %550 = vmatpush1.bf16.msra.mxu0 %v485
    %551 = vmatprep.subr.bf16.mxu0 %v488
    %552 = vmatpush1.bf16.msra.mxu0 %v487
    %553 = vmatprep.subr.bf16.mxu0 %v490
    %554 = vmatpush1.bf16.msra.mxu0 %v489
    %555 = vmatprep.subr.bf16.mxu0 %v492
    %556 = vmatpush1.bf16.msra.mxu0 %v491
    %557 = vmatprep.subr.bf16.mxu0 %v494
    %558 = vmatpush1.bf16.msra.mxu0 %v493
    %559 = vmatprep.mubr.bf16.mxu0 %v360
    %560 = vmatmul.mubr.bf16.gmra.mrb[0].mxu0 %v359
    %v561 = vpop.f32.mrb[0].mxu0
    %v562 = vadd.f32 %v340, %v561
    %v563 = vpop.f32.mrb[0].mxu0
    %v564 = vadd.f32 %v344, %v563
    %v565 = vpop.f32.mrb[0].mxu0
    %v566 = vadd.f32 %v340, %v565
    %v567 = vpop.f32.mrb[0].mxu0
    %v568 = vadd.f32 %v344, %v567
    %569 = vmatprep.mubr.bf16.mxu0 %v362
    %570 = vmatmul.mubr.bf16.gmra.mrb[0].mxu0 %v361
    %v571 = vpop.f32.mrb[0].mxu0
    %v572 = vadd.f32 %v340, %v571
    %v573 = vpop.f32.mrb[0].mxu0
    %v574 = vadd.f32 %v344, %v573
    %v575 = vpop.f32.mrb[0].mxu0
    %v576 = vadd.f32 %v340, %v575
    %v577 = vpop.f32.mrb[0].mxu0
    %v578 = vadd.f32 %v344, %v577
    %579 = vdwg.mxu0
    %v580 = vld [vmem:[%s5] sm:$0x1]
    %v581 = vld [vmem:[%s5 + $0x1] sm:$0x1]
    %v584 = vcombine.low %v291, %v293
    %v585 = vcombine.high %v291, %v293
    %v587 = vunpack.c.l.s4 1966171168
    %v588 = vunpack.c.0.s8 %v587
    %v589 = vlaneseq
    %v590 = vshrl.u32 %v589, 7
    %v591 = vsub.s32 %v588, %v590
    %v592 = vrot.slane %v584, %v591
    %v594 = vunpack.c.l.s4 1966171168
    %v595 = vunpack.c.0.s8 %v594
    %v596 = vlaneseq
    %v597 = vshrl.u32 %v596, 7
    %v598 = vsub.s32 %v595, %v597
    %v599 = vrot.slane %v585, %v598
    %v600 = vcombine.high %v592, %v592
    %v601 = vcombine.high %v599, %v599
    %v603 = vunpack.c.l.s4 1966171168
    %v604 = vunpack.c.0.s8 %v603
    %v605 = vlaneseq
    %v606 = vshrl.u32 %v605, 7
    %v607 = vsub.s32 %v604, %v606
    %v608 = vrot.slane %v592, %v607
    %v610 = vunpack.c.l.s4 1966171168
    %v611 = vunpack.c.0.s8 %v610
    %v612 = vlaneseq
    %v613 = vshrl.u32 %v612, 7
    %v614 = vsub.s32 %v611, %v613
    %v615 = vrot.slane %v599, %v614
    %v617 = vunpack.c.l.s4 1966171168
    %v618 = vunpack.c.0.s8 %v617
    %v619 = vlaneseq
    %v620 = vshrl.u32 %v619, 7
    %v621 = vsub.s32 %v618, %v620
    %v622 = vrot.slane %v600, %v621
    %v624 = vunpack.c.l.s4 1966171168
    %v625 = vunpack.c.0.s8 %v624
    %v626 = vlaneseq
    %v627 = vshrl.u32 %v626, 7
    %v628 = vsub.s32 %v625, %v627
    %v629 = vrot.slane %v601, %v628
    %v630 = vcombine.high %v608, %v608
    %v631 = vcombine.high %v615, %v615
    %v632 = vcombine.high %v622, %v622
    %v633 = vcombine.high %v629, %v629
    %v634 = vlaneseq
    %v635 = vshrl.u32 %v634, 7
    %v636 = vsub.s32 0, %v635
    %v637 = vrot.slane %v608, %v636
    %v638 = vlaneseq
    %v639 = vshrl.u32 %v638, 7
    %v640 = vsub.s32 1, %v639
    %v641 = vrot.slane %v608, %v640
    %v642 = vlaneseq
    %v643 = vshrl.u32 %v642, 7
    %v644 = vsub.s32 0, %v643
    %v645 = vrot.slane %v622, %v644
    %v646 = vlaneseq
    %v647 = vshrl.u32 %v646, 7
    %v648 = vsub.s32 1, %v647
    %v649 = vrot.slane %v622, %v648
    %v650 = vlaneseq
    %v651 = vshrl.u32 %v650, 7
    %v652 = vsub.s32 0, %v651
    %v653 = vrot.slane %v630, %v652
    %v654 = vlaneseq
    %v655 = vshrl.u32 %v654, 7
    %v656 = vsub.s32 1, %v655
    %v657 = vrot.slane %v630, %v656
    %v658 = vlaneseq
    %v659 = vshrl.u32 %v658, 7
    %v660 = vsub.s32 0, %v659
    %v661 = vrot.slane %v632, %v660
    %v662 = vlaneseq
    %v663 = vshrl.u32 %v662, 7
    %v664 = vsub.s32 1, %v663
    %v665 = vrot.slane %v632, %v664
    %v666 = vlaneseq
    %v667 = vshrl.u32 %v666, 7
    %v668 = vsub.s32 0, %v667
    %v669 = vrot.slane %v615, %v668
    %v670 = vlaneseq
    %v671 = vshrl.u32 %v670, 7
    %v672 = vsub.s32 1, %v671
    %v673 = vrot.slane %v615, %v672
    %v674 = vlaneseq
    %v675 = vshrl.u32 %v674, 7
    %v676 = vsub.s32 0, %v675
    %v677 = vrot.slane %v629, %v676
    %v678 = vlaneseq
    %v679 = vshrl.u32 %v678, 7
    %v680 = vsub.s32 1, %v679
    %v681 = vrot.slane %v629, %v680
    %v682 = vlaneseq
    %v683 = vshrl.u32 %v682, 7
    %v684 = vsub.s32 0, %v683
    %v685 = vrot.slane %v631, %v684
    %v686 = vlaneseq
    %v687 = vshrl.u32 %v686, 7
    %v688 = vsub.s32 1, %v687
    %v689 = vrot.slane %v631, %v688
    %v690 = vlaneseq
    %v691 = vshrl.u32 %v690, 7
    %v692 = vsub.s32 0, %v691
    %v693 = vrot.slane %v633, %v692
    %v694 = vlaneseq
    %v695 = vshrl.u32 %v694, 7
    %v696 = vsub.s32 1, %v695
    %v697 = vrot.slane %v633, %v696
    %v714 = vadd.f32 %v637, %v562
    %v715 = vadd.f32 %v641, %v564
    %v716 = vadd.f32 %v637, %v566
    %v717 = vadd.f32 %v641, %v568
    %v718 = vadd.f32 %v645, %v562
    %v719 = vadd.f32 %v649, %v564
    %v720 = vadd.f32 %v645, %v566
    %v721 = vadd.f32 %v649, %v568
    %v722 = vadd.f32 %v653, %v562
    %v723 = vadd.f32 %v657, %v564
    %v724 = vadd.f32 %v653, %v566
    %v725 = vadd.f32 %v657, %v568
    %v726 = vadd.f32 %v661, %v562
    %v727 = vadd.f32 %v665, %v564
    %v728 = vadd.f32 %v661, %v566
    %v729 = vadd.f32 %v665, %v568
    %v730 = vadd.f32 %v669, %v562
    %v731 = vadd.f32 %v673, %v564
    %v732 = vadd.f32 %v669, %v566
    %v733 = vadd.f32 %v673, %v568
    %v734 = vadd.f32 %v677, %v562
    %v735 = vadd.f32 %v681, %v564
    %v736 = vadd.f32 %v677, %v566
    %v737 = vadd.f32 %v681, %v568
    %v738 = vadd.f32 %v685, %v562
    %v739 = vadd.f32 %v689, %v564
    %v740 = vadd.f32 %v685, %v566
    %v741 = vadd.f32 %v689, %v568
    %v742 = vadd.f32 %v693, %v562
    %v743 = vadd.f32 %v697, %v564
    %v744 = vadd.f32 %v693, %v566
    %v745 = vadd.f32 %v697, %v568
    %v746 = vmax.f32 %v714, 0.0
    %v747 = vmax.f32 %v715, 0.0
    %v748 = vmax.f32 %v716, 0.0
    %v749 = vmax.f32 %v717, 0.0
    %v750 = vmax.f32 %v718, 0.0
    %v751 = vmax.f32 %v719, 0.0
    %v752 = vmax.f32 %v720, 0.0
    %v753 = vmax.f32 %v721, 0.0
    %v754 = vmax.f32 %v722, 0.0
    %v755 = vmax.f32 %v723, 0.0
    %v756 = vmax.f32 %v724, 0.0
    %v757 = vmax.f32 %v725, 0.0
    %v758 = vmax.f32 %v726, 0.0
    %v759 = vmax.f32 %v727, 0.0
    %v760 = vmax.f32 %v728, 0.0
    %v761 = vmax.f32 %v729, 0.0
    %v762 = vmax.f32 %v730, 0.0
    %v763 = vmax.f32 %v731, 0.0
    %v764 = vmax.f32 %v732, 0.0
    %v765 = vmax.f32 %v733, 0.0
    %v766 = vmax.f32 %v734, 0.0
    %v767 = vmax.f32 %v735, 0.0
    %v768 = vmax.f32 %v736, 0.0
    %v769 = vmax.f32 %v737, 0.0
    %v770 = vmax.f32 %v738, 0.0
    %v771 = vmax.f32 %v739, 0.0
    %v772 = vmax.f32 %v740, 0.0
    %v773 = vmax.f32 %v741, 0.0
    %v774 = vmax.f32 %v742, 0.0
    %v775 = vmax.f32 %v743, 0.0
    %v776 = vmax.f32 %v744, 0.0
    %v777 = vmax.f32 %v745, 0.0
    %v779 = vlaneseq
    %v780 = vshrl.u32 %v779, 7
    %v781 = vsub.s32 0, %v780
    %v782 = vrot.slane %v580, %v781
    %v784 = vmul.f32 %v746, %v782
    %v785 = vmul.f32 %v748, %v782
    %v786 = vmul.f32 %v750, %v782
    %v787 = vmul.f32 %v752, %v782
    %v788 = vmul.f32 %v754, %v782
    %v789 = vmul.f32 %v756, %v782
    %v790 = vmul.f32 %v758, %v782
    %v791 = vmul.f32 %v760, %v782
    %v792 = vmul.f32 %v762, %v782
    %v793 = vmul.f32 %v764, %v782
    %v794 = vmul.f32 %v766, %v782
    %v795 = vmul.f32 %v768, %v782
    %v796 = vmul.f32 %v770, %v782
    %v797 = vmul.f32 %v772, %v782
    %v798 = vmul.f32 %v774, %v782
    %v799 = vmul.f32 %v776, %v782
    %v801 = vlaneseq
    %v802 = vshrl.u32 %v801, 7
    %v803 = vsub.s32 0, %v802
    %v804 = vrot.slane %v581, %v803
    %v806 = vmul.f32 %v747, %v804
    %v807 = vmul.f32 %v749, %v804
    %v808 = vmul.f32 %v751, %v804
    %v809 = vmul.f32 %v753, %v804
    %v810 = vmul.f32 %v755, %v804
    %v811 = vmul.f32 %v757, %v804
    %v812 = vmul.f32 %v759, %v804
    %v813 = vmul.f32 %v761, %v804
    %v814 = vmul.f32 %v763, %v804
    %v815 = vmul.f32 %v765, %v804
    %v816 = vmul.f32 %v767, %v804
    %v817 = vmul.f32 %v769, %v804
    %v818 = vmul.f32 %v771, %v804
    %v819 = vmul.f32 %v773, %v804
    %v820 = vmul.f32 %v775, %v804
    %v821 = vmul.f32 %v777, %v804
    %v822 = vadd.f32 %v784, %v806
    %v823 = vadd.f32 %v785, %v807
    %v824 = vadd.f32 %v786, %v808
    %v825 = vadd.f32 %v787, %v809
    %v826 = vadd.f32 %v788, %v810
    %v827 = vadd.f32 %v789, %v811
    %v828 = vadd.f32 %v790, %v812
    %v829 = vadd.f32 %v791, %v813
    %v830 = vadd.f32 %v792, %v814
    %v831 = vadd.f32 %v793, %v815
    %v832 = vadd.f32 %v794, %v816
    %v833 = vadd.f32 %v795, %v817
    %v834 = vadd.f32 %v796, %v818
    %v835 = vadd.f32 %v797, %v819
    %v836 = vadd.f32 %v798, %v820
    %v837 = vadd.f32 %v799, %v821
    %838 = vadd.xlane.f32.xlu0 %v822
    %v839 = vpop.xlane.xlu0 %838
    %840 = vadd.xlane.f32.xlu0 %v823
    %v841 = vpop.xlane.xlu0 %840
    %842 = vadd.xlane.f32.xlu0 %v824
    %v843 = vpop.xlane.xlu0 %842
    %844 = vadd.xlane.f32.xlu0 %v825
    %v845 = vpop.xlane.xlu0 %844
    %846 = vadd.xlane.f32.xlu0 %v826
    %v847 = vpop.xlane.xlu0 %846
    %848 = vadd.xlane.f32.xlu0 %v827
    %v849 = vpop.xlane.xlu0 %848
    %850 = vadd.xlane.f32.xlu0 %v828
    %v851 = vpop.xlane.xlu0 %850
    %852 = vadd.xlane.f32.xlu0 %v829
    %v853 = vpop.xlane.xlu0 %852
    %854 = vadd.xlane.f32.xlu0 %v830
    %v855 = vpop.xlane.xlu0 %854
    %856 = vadd.xlane.f32.xlu0 %v831
    %v857 = vpop.xlane.xlu0 %856
    %858 = vadd.xlane.f32.xlu0 %v832
    %v859 = vpop.xlane.xlu0 %858
    %860 = vadd.xlane.f32.xlu0 %v833
    %v861 = vpop.xlane.xlu0 %860
    %862 = vadd.xlane.f32.xlu0 %v834
    %v863 = vpop.xlane.xlu0 %862
    %864 = vadd.xlane.f32.xlu0 %v835
    %v865 = vpop.xlane.xlu0 %864
    %866 = vadd.xlane.f32.xlu0 %v836
    %v867 = vpop.xlane.xlu0 %866
    %868 = vadd.xlane.f32.xlu0 %v837
    %v869 = vpop.xlane.xlu0 %868
    %v886 = vlaneseq
    %v887 = vand.u32 %v886, 127
    %v888 = vlaneseq
    %v889 = vshrl.u32 %v888, 7
    %v890 = vsub.s32 %v887, %v889
    %v891 = vrot.slane %v839, %v890
    %v892 = vadd.s32 %v887, 4294967288
    %v893 = vlaneseq
    %v894 = vshrl.u32 %v893, 7
    %v895 = vsub.s32 %v892, %v894
    %v896 = vrot.slane %v841, %v895
    %vm897 = vcmask 130112
    %v898 = vsel %vm897, %v896, %v891
    %v899 = vlaneseq
    %v900 = vshrl.u32 %v899, 7
    %v901 = vsub.s32 %v887, %v900
    %v902 = vrot.slane %v843, %v901
    %v903 = vlaneseq
    %v904 = vshrl.u32 %v903, 7
    %v905 = vsub.s32 %v892, %v904
    %v906 = vrot.slane %v845, %v905
    %v907 = vsel %vm897, %v906, %v902
    %v908 = vlaneseq
    %v909 = vshrl.u32 %v908, 7
    %v910 = vsub.s32 %v887, %v909
    %v911 = vrot.slane %v847, %v910
    %v912 = vlaneseq
    %v913 = vshrl.u32 %v912, 7
    %v914 = vsub.s32 %v892, %v913
    %v915 = vrot.slane %v849, %v914
    %v916 = vsel %vm897, %v915, %v911
    %v917 = vlaneseq
    %v918 = vshrl.u32 %v917, 7
    %v919 = vsub.s32 %v887, %v918
    %v920 = vrot.slane %v851, %v919
    %v921 = vlaneseq
    %v922 = vshrl.u32 %v921, 7
    %v923 = vsub.s32 %v892, %v922
    %v924 = vrot.slane %v853, %v923
    %v925 = vsel %vm897, %v924, %v920
    %v926 = vlaneseq
    %v927 = vshrl.u32 %v926, 7
    %v928 = vsub.s32 %v887, %v927
    %v929 = vrot.slane %v855, %v928
    %v930 = vlaneseq
    %v931 = vshrl.u32 %v930, 7
    %v932 = vsub.s32 %v892, %v931
    %v933 = vrot.slane %v857, %v932
    %v934 = vsel %vm897, %v933, %v929
    %v935 = vlaneseq
    %v936 = vshrl.u32 %v935, 7
    %v937 = vsub.s32 %v887, %v936
    %v938 = vrot.slane %v859, %v937
    %v939 = vlaneseq
    %v940 = vshrl.u32 %v939, 7
    %v941 = vsub.s32 %v892, %v940
    %v942 = vrot.slane %v861, %v941
    %v943 = vsel %vm897, %v942, %v938
    %v944 = vlaneseq
    %v945 = vshrl.u32 %v944, 7
    %v946 = vsub.s32 %v887, %v945
    %v947 = vrot.slane %v863, %v946
    %v948 = vlaneseq
    %v949 = vshrl.u32 %v948, 7
    %v950 = vsub.s32 %v892, %v949
    %v951 = vrot.slane %v865, %v950
    %v952 = vsel %vm897, %v951, %v947
    %v953 = vlaneseq
    %v954 = vshrl.u32 %v953, 7
    %v955 = vsub.s32 %v887, %v954
    %v956 = vrot.slane %v867, %v955
    %v957 = vlaneseq
    %v958 = vshrl.u32 %v957, 7
    %v959 = vsub.s32 %v892, %v958
    %v960 = vrot.slane %v869, %v959
    %v961 = vsel %vm897, %v960, %v956
    %vm962 = vcmask 1041409
    %v963 = vsel %vm962, %v907, %v898
    %vm964 = vcmask 1042434
    %v965 = vsel %vm964, %v916, %v963
    %vm966 = vcmask 1043459
    %v967 = vsel %vm966, %v925, %v965
    %vm968 = vcmask 1044484
    %v969 = vsel %vm968, %v934, %v967
    %vm970 = vcmask 1045509
    %v971 = vsel %vm970, %v943, %v969
    %vm972 = vcmask 1046534
    %v973 = vsel %vm972, %v952, %v971
    %vm974 = vcmask 1047559
    %v975 = vsel %vm974, %v961, %v973
    %vm977 = vcmask 130048
    %v978 = vsel %vm977, %v975, -inf
    %979 = vmax.xlane.f32.xlu0 %v978
    %v980 = vpop.xlane.xlu0 %979
    %v982 = vlaneseq
    %v983 = vshrl.u32 %v982, 7
    %v984 = vsub.s32 0, %v983
    %v985 = vrot.slane %v980, %v984
    %v986 = vlaneseq
    %v987 = vshrl.u32 %v986, 7
    %v988 = vsub.s32 1, %v987
    %v989 = vrot.slane %v980, %v988
    %v990 = vlaneseq
    %v991 = vshrl.u32 %v990, 7
    %v992 = vsub.s32 2, %v991
    %v993 = vrot.slane %v980, %v992
    %v994 = vlaneseq
    %v995 = vshrl.u32 %v994, 7
    %v996 = vsub.s32 3, %v995
    %v997 = vrot.slane %v980, %v996
    %v998 = vlaneseq
    %v999 = vshrl.u32 %v998, 7
    %v1000 = vsub.s32 4, %v999
    %v1001 = vrot.slane %v980, %v1000
    %v1002 = vlaneseq
    %v1003 = vshrl.u32 %v1002, 7
    %v1004 = vsub.s32 5, %v1003
    %v1005 = vrot.slane %v980, %v1004
    %v1006 = vlaneseq
    %v1007 = vshrl.u32 %v1006, 7
    %v1008 = vsub.s32 6, %v1007
    %v1009 = vrot.slane %v980, %v1008
    %v1010 = vlaneseq
    %v1011 = vshrl.u32 %v1010, 7
    %v1012 = vsub.s32 7, %v1011
    %v1013 = vrot.slane %v980, %v1012
    %v1022 = vsub.f32 %v839, %v985
    %v1023 = vsub.f32 %v841, %v985
    %v1024 = vsub.f32 %v843, %v989
    %v1025 = vsub.f32 %v845, %v989
    %v1026 = vsub.f32 %v847, %v993
    %v1027 = vsub.f32 %v849, %v993
    %v1028 = vsub.f32 %v851, %v997
    %v1029 = vsub.f32 %v853, %v997
    %v1030 = vsub.f32 %v855, %v1001
    %v1031 = vsub.f32 %v857, %v1001
    %v1032 = vsub.f32 %v859, %v1005
    %v1033 = vsub.f32 %v861, %v1005
    %v1034 = vsub.f32 %v863, %v1009
    %v1035 = vsub.f32 %v865, %v1009
    %v1036 = vsub.f32 %v867, %v1013
    %v1037 = vsub.f32 %v869, %v1013
    %v1038 = vmul.f32 %v1022, 1.442695
    %v1039 = vpow.pop %v1038
    %v1040 = vmul.f32 %v1023, 1.442695
    %v1041 = vpow.pop %v1040
    %v1042 = vmul.f32 %v1024, 1.442695
    %v1043 = vpow.pop %v1042
    %v1044 = vmul.f32 %v1025, 1.442695
    %v1045 = vpow.pop %v1044
    %v1046 = vmul.f32 %v1026, 1.442695
    %v1047 = vpow.pop %v1046
    %v1048 = vmul.f32 %v1027, 1.442695
    %v1049 = vpow.pop %v1048
    %v1050 = vmul.f32 %v1028, 1.442695
    %v1051 = vpow.pop %v1050
    %v1052 = vmul.f32 %v1029, 1.442695
    %v1053 = vpow.pop %v1052
    %v1054 = vmul.f32 %v1030, 1.442695
    %v1055 = vpow.pop %v1054
    %v1056 = vmul.f32 %v1031, 1.442695
    %v1057 = vpow.pop %v1056
    %v1058 = vmul.f32 %v1032, 1.442695
    %v1059 = vpow.pop %v1058
    %v1060 = vmul.f32 %v1033, 1.442695
    %v1061 = vpow.pop %v1060
    %v1062 = vmul.f32 %v1034, 1.442695
    %v1063 = vpow.pop %v1062
    %v1064 = vmul.f32 %v1035, 1.442695
    %v1065 = vpow.pop %v1064
    %v1066 = vmul.f32 %v1036, 1.442695
    %v1067 = vpow.pop %v1066
    %v1068 = vmul.f32 %v1037, 1.442695
    %v1069 = vpow.pop %v1068
    %1086 = vset.pattern.permute.xlu0 0
    %1087 = vperm.xlu0 %1086, %v1039
    %v1088 = vpop.permute.xlu0 %1087
    %1089 = vset.pattern.permute.xlu0 0
    %1090 = vperm.xlu0 %1089, %v1041
    %v1091 = vpop.permute.xlu0 %1090
    %1092 = vset.pattern.permute.xlu0 0
    %1093 = vperm.xlu0 %1092, %v1043
    %v1094 = vpop.permute.xlu0 %1093
    %1095 = vset.pattern.permute.xlu0 0
    %1096 = vperm.xlu0 %1095, %v1045
    %v1097 = vpop.permute.xlu0 %1096
    %1098 = vset.pattern.permute.xlu0 0
    %1099 = vperm.xlu0 %1098, %v1047
    %v1100 = vpop.permute.xlu0 %1099
    %1101 = vset.pattern.permute.xlu0 0
    %1102 = vperm.xlu0 %1101, %v1049
    %v1103 = vpop.permute.xlu0 %1102
    %1104 = vset.pattern.permute.xlu0 0
    %1105 = vperm.xlu0 %1104, %v1051
    %v1106 = vpop.permute.xlu0 %1105
    %1107 = vset.pattern.permute.xlu0 0
    %1108 = vperm.xlu0 %1107, %v1053
    %v1109 = vpop.permute.xlu0 %1108
    %1110 = vset.pattern.permute.xlu0 0
    %1111 = vperm.xlu0 %1110, %v1055
    %v1112 = vpop.permute.xlu0 %1111
    %1113 = vset.pattern.permute.xlu0 0
    %1114 = vperm.xlu0 %1113, %v1057
    %v1115 = vpop.permute.xlu0 %1114
    %1116 = vset.pattern.permute.xlu0 0
    %1117 = vperm.xlu0 %1116, %v1059
    %v1118 = vpop.permute.xlu0 %1117
    %1119 = vset.pattern.permute.xlu0 0
    %1120 = vperm.xlu0 %1119, %v1061
    %v1121 = vpop.permute.xlu0 %1120
    %1122 = vset.pattern.permute.xlu0 0
    %1123 = vperm.xlu0 %1122, %v1063
    %v1124 = vpop.permute.xlu0 %1123
    %1125 = vset.pattern.permute.xlu0 0
    %1126 = vperm.xlu0 %1125, %v1065
    %v1127 = vpop.permute.xlu0 %1126
    %1128 = vset.pattern.permute.xlu0 0
    %1129 = vperm.xlu0 %1128, %v1067
    %v1130 = vpop.permute.xlu0 %1129
    %1131 = vset.pattern.permute.xlu0 0
    %1132 = vperm.xlu0 %1131, %v1069
    %v1133 = vpop.permute.xlu0 %1132
    %v1134 = vlaneseq
    %v1135 = vshrl.u32 %v1134, 7
    %v1136 = vsub.s32 %v887, %v1135
    %v1137 = vrot.slane %v1088, %v1136
    %v1138 = vlaneseq
    %v1139 = vshrl.u32 %v1138, 7
    %v1140 = vsub.s32 %v892, %v1139
    %v1141 = vrot.slane %v1091, %v1140
    %v1142 = vsel %vm897, %v1141, %v1137
    %v1143 = vlaneseq
    %v1144 = vshrl.u32 %v1143, 7
    %v1145 = vsub.s32 %v887, %v1144
    %v1146 = vrot.slane %v1094, %v1145
    %v1147 = vlaneseq
    %v1148 = vshrl.u32 %v1147, 7
    %v1149 = vsub.s32 %v892, %v1148
    %v1150 = vrot.slane %v1097, %v1149
    %v1151 = vsel %vm897, %v1150, %v1146
    %v1152 = vlaneseq
    %v1153 = vshrl.u32 %v1152, 7
    %v1154 = vsub.s32 %v887, %v1153
    %v1155 = vrot.slane %v1100, %v1154
    %v1156 = vlaneseq
    %v1157 = vshrl.u32 %v1156, 7
    %v1158 = vsub.s32 %v892, %v1157
    %v1159 = vrot.slane %v1103, %v1158
    %v1160 = vsel %vm897, %v1159, %v1155
    %v1161 = vlaneseq
    %v1162 = vshrl.u32 %v1161, 7
    %v1163 = vsub.s32 %v887, %v1162
    %v1164 = vrot.slane %v1106, %v1163
    %v1165 = vlaneseq
    %v1166 = vshrl.u32 %v1165, 7
    %v1167 = vsub.s32 %v892, %v1166
    %v1168 = vrot.slane %v1109, %v1167
    %v1169 = vsel %vm897, %v1168, %v1164
    %v1170 = vlaneseq
    %v1171 = vshrl.u32 %v1170, 7
    %v1172 = vsub.s32 %v887, %v1171
    %v1173 = vrot.slane %v1112, %v1172
    %v1174 = vlaneseq
    %v1175 = vshrl.u32 %v1174, 7
    %v1176 = vsub.s32 %v892, %v1175
    %v1177 = vrot.slane %v1115, %v1176
    %v1178 = vsel %vm897, %v1177, %v1173
    %v1179 = vlaneseq
    %v1180 = vshrl.u32 %v1179, 7
    %v1181 = vsub.s32 %v887, %v1180
    %v1182 = vrot.slane %v1118, %v1181
    %v1183 = vlaneseq
    %v1184 = vshrl.u32 %v1183, 7
    %v1185 = vsub.s32 %v892, %v1184
    %v1186 = vrot.slane %v1121, %v1185
    %v1187 = vsel %vm897, %v1186, %v1182
    %v1188 = vlaneseq
    %v1189 = vshrl.u32 %v1188, 7
    %v1190 = vsub.s32 %v887, %v1189
    %v1191 = vrot.slane %v1124, %v1190
    %v1192 = vlaneseq
    %v1193 = vshrl.u32 %v1192, 7
    %v1194 = vsub.s32 %v892, %v1193
    %v1195 = vrot.slane %v1127, %v1194
    %v1196 = vsel %vm897, %v1195, %v1191
    %v1197 = vlaneseq
    %v1198 = vshrl.u32 %v1197, 7
    %v1199 = vsub.s32 %v887, %v1198
    %v1200 = vrot.slane %v1130, %v1199
    %v1201 = vlaneseq
    %v1202 = vshrl.u32 %v1201, 7
    %v1203 = vsub.s32 %v892, %v1202
    %v1204 = vrot.slane %v1133, %v1203
    %v1205 = vsel %vm897, %v1204, %v1200
    %v1206 = vsel %vm962, %v1151, %v1142
    %v1207 = vsel %vm964, %v1160, %v1206
    %v1208 = vsel %vm966, %v1169, %v1207
    %v1209 = vsel %vm968, %v1178, %v1208
    %v1210 = vsel %vm970, %v1187, %v1209
    %v1211 = vsel %vm972, %v1196, %v1210
    %v1212 = vsel %vm974, %v1205, %v1211
    %v1214 = vsel %vm977, %v1212, 0.0
    %1215 = vadd.xlane.f32.xlu0 %v1214
    %v1216 = vpop.xlane.xlu0 %1215
    %v1217 = vrcp.pop %v1216
    %v1219 = vlaneseq
    %v1220 = vshrl.u32 %v1219, 7
    %v1221 = vsub.s32 0, %v1220
    %v1222 = vrot.slane %v1217, %v1221
    %v1223 = vlaneseq
    %v1224 = vshrl.u32 %v1223, 7
    %v1225 = vsub.s32 1, %v1224
    %v1226 = vrot.slane %v1217, %v1225
    %v1227 = vlaneseq
    %v1228 = vshrl.u32 %v1227, 7
    %v1229 = vsub.s32 2, %v1228
    %v1230 = vrot.slane %v1217, %v1229
    %v1231 = vlaneseq
    %v1232 = vshrl.u32 %v1231, 7
    %v1233 = vsub.s32 3, %v1232
    %v1234 = vrot.slane %v1217, %v1233
    %v1235 = vlaneseq
    %v1236 = vshrl.u32 %v1235, 7
    %v1237 = vsub.s32 4, %v1236
    %v1238 = vrot.slane %v1217, %v1237
    %v1239 = vlaneseq
    %v1240 = vshrl.u32 %v1239, 7
    %v1241 = vsub.s32 5, %v1240
    %v1242 = vrot.slane %v1217, %v1241
    %v1243 = vlaneseq
    %v1244 = vshrl.u32 %v1243, 7
    %v1245 = vsub.s32 6, %v1244
    %v1246 = vrot.slane %v1217, %v1245
    %v1247 = vlaneseq
    %v1248 = vshrl.u32 %v1247, 7
    %v1249 = vsub.s32 7, %v1248
    %v1250 = vrot.slane %v1217, %v1249
    %v1259 = vmul.f32 %v1039, %v1222
    %v1260 = vmul.f32 %v1041, %v1222
    %v1261 = vmul.f32 %v1043, %v1226
    %v1262 = vmul.f32 %v1045, %v1226
    %v1263 = vmul.f32 %v1047, %v1230
    %v1264 = vmul.f32 %v1049, %v1230
    %v1265 = vmul.f32 %v1051, %v1234
    %v1266 = vmul.f32 %v1053, %v1234
    %v1267 = vmul.f32 %v1055, %v1238
    %v1268 = vmul.f32 %v1057, %v1238
    %v1269 = vmul.f32 %v1059, %v1242
    %v1270 = vmul.f32 %v1061, %v1242
    %v1271 = vmul.f32 %v1063, %v1246
    %v1272 = vmul.f32 %v1065, %v1246
    %v1273 = vmul.f32 %v1067, %v1250
    %v1274 = vmul.f32 %v1069, %v1250
    %1291 = vset.pattern.permute.xlu0 0
    %1292 = vperm.xlu0 %1291, %v1259
    %v1293 = vpop.permute.xlu0 %1292
    %1294 = vset.pattern.permute.xlu0 0
    %1295 = vperm.xlu0 %1294, %v1260
    %v1296 = vpop.permute.xlu0 %1295
    %1297 = vset.pattern.permute.xlu0 0
    %1298 = vperm.xlu0 %1297, %v1261
    %v1299 = vpop.permute.xlu0 %1298
    %1300 = vset.pattern.permute.xlu0 0
    %1301 = vperm.xlu0 %1300, %v1262
    %v1302 = vpop.permute.xlu0 %1301
    %1303 = vset.pattern.permute.xlu0 0
    %1304 = vperm.xlu0 %1303, %v1263
    %v1305 = vpop.permute.xlu0 %1304
    %1306 = vset.pattern.permute.xlu0 0
    %1307 = vperm.xlu0 %1306, %v1264
    %v1308 = vpop.permute.xlu0 %1307
    %1309 = vset.pattern.permute.xlu0 0
    %1310 = vperm.xlu0 %1309, %v1265
    %v1311 = vpop.permute.xlu0 %1310
    %1312 = vset.pattern.permute.xlu0 0
    %1313 = vperm.xlu0 %1312, %v1266
    %v1314 = vpop.permute.xlu0 %1313
    %1315 = vset.pattern.permute.xlu0 0
    %1316 = vperm.xlu0 %1315, %v1267
    %v1317 = vpop.permute.xlu0 %1316
    %1318 = vset.pattern.permute.xlu0 0
    %1319 = vperm.xlu0 %1318, %v1268
    %v1320 = vpop.permute.xlu0 %1319
    %1321 = vset.pattern.permute.xlu0 0
    %1322 = vperm.xlu0 %1321, %v1269
    %v1323 = vpop.permute.xlu0 %1322
    %1324 = vset.pattern.permute.xlu0 0
    %1325 = vperm.xlu0 %1324, %v1270
    %v1326 = vpop.permute.xlu0 %1325
    %1327 = vset.pattern.permute.xlu0 0
    %1328 = vperm.xlu0 %1327, %v1271
    %v1329 = vpop.permute.xlu0 %1328
    %1330 = vset.pattern.permute.xlu0 0
    %1331 = vperm.xlu0 %1330, %v1272
    %v1332 = vpop.permute.xlu0 %1331
    %1333 = vset.pattern.permute.xlu0 0
    %1334 = vperm.xlu0 %1333, %v1273
    %v1335 = vpop.permute.xlu0 %1334
    %1336 = vset.pattern.permute.xlu0 0
    %1337 = vperm.xlu0 %1336, %v1274
    %v1338 = vpop.permute.xlu0 %1337
    %v1339 = vlaneseq
    %v1340 = vshrl.u32 %v1339, 7
    %v1341 = vsub.s32 %v887, %v1340
    %v1342 = vrot.slane %v1293, %v1341
    %v1343 = vlaneseq
    %v1344 = vshrl.u32 %v1343, 7
    %v1345 = vsub.s32 %v892, %v1344
    %v1346 = vrot.slane %v1296, %v1345
    %v1347 = vsel %vm897, %v1346, %v1342
    %v1348 = vlaneseq
    %v1349 = vshrl.u32 %v1348, 7
    %v1350 = vsub.s32 %v887, %v1349
    %v1351 = vrot.slane %v1299, %v1350
    %v1352 = vlaneseq
    %v1353 = vshrl.u32 %v1352, 7
    %v1354 = vsub.s32 %v892, %v1353
    %v1355 = vrot.slane %v1302, %v1354
    %v1356 = vsel %vm897, %v1355, %v1351
    %v1357 = vlaneseq
    %v1358 = vshrl.u32 %v1357, 7
    %v1359 = vsub.s32 %v887, %v1358
    %v1360 = vrot.slane %v1305, %v1359
    %v1361 = vlaneseq
    %v1362 = vshrl.u32 %v1361, 7
    %v1363 = vsub.s32 %v892, %v1362
    %v1364 = vrot.slane %v1308, %v1363
    %v1365 = vsel %vm897, %v1364, %v1360
    %v1366 = vlaneseq
    %v1367 = vshrl.u32 %v1366, 7
    %v1368 = vsub.s32 %v887, %v1367
    %v1369 = vrot.slane %v1311, %v1368
    %v1370 = vlaneseq
    %v1371 = vshrl.u32 %v1370, 7
    %v1372 = vsub.s32 %v892, %v1371
    %v1373 = vrot.slane %v1314, %v1372
    %v1374 = vsel %vm897, %v1373, %v1369
    %v1375 = vlaneseq
    %v1376 = vshrl.u32 %v1375, 7
    %v1377 = vsub.s32 %v887, %v1376
    %v1378 = vrot.slane %v1317, %v1377
    %v1379 = vlaneseq
    %v1380 = vshrl.u32 %v1379, 7
    %v1381 = vsub.s32 %v892, %v1380
    %v1382 = vrot.slane %v1320, %v1381
    %v1383 = vsel %vm897, %v1382, %v1378
    %v1384 = vlaneseq
    %v1385 = vshrl.u32 %v1384, 7
    %v1386 = vsub.s32 %v887, %v1385
    %v1387 = vrot.slane %v1323, %v1386
    %v1388 = vlaneseq
    %v1389 = vshrl.u32 %v1388, 7
    %v1390 = vsub.s32 %v892, %v1389
    %v1391 = vrot.slane %v1326, %v1390
    %v1392 = vsel %vm897, %v1391, %v1387
    %v1393 = vlaneseq
    %v1394 = vshrl.u32 %v1393, 7
    %v1395 = vsub.s32 %v887, %v1394
    %v1396 = vrot.slane %v1329, %v1395
    %v1397 = vlaneseq
    %v1398 = vshrl.u32 %v1397, 7
    %v1399 = vsub.s32 %v892, %v1398
    %v1400 = vrot.slane %v1332, %v1399
    %v1401 = vsel %vm897, %v1400, %v1396
    %v1402 = vlaneseq
    %v1403 = vshrl.u32 %v1402, 7
    %v1404 = vsub.s32 %v887, %v1403
    %v1405 = vrot.slane %v1335, %v1404
    %v1406 = vlaneseq
    %v1407 = vshrl.u32 %v1406, 7
    %v1408 = vsub.s32 %v892, %v1407
    %v1409 = vrot.slane %v1338, %v1408
    %v1410 = vsel %vm897, %v1409, %v1405
    %v1411 = vsel %vm962, %v1356, %v1347
    %v1412 = vsel %vm964, %v1365, %v1411
    %v1413 = vsel %vm966, %v1374, %v1412
    %v1414 = vsel %vm968, %v1383, %v1413
    %v1415 = vsel %vm970, %v1392, %v1414
    %v1416 = vsel %vm972, %v1401, %v1415
    %v1417 = vsel %vm974, %v1410, %v1416
    %1419 = vst.msk [vmem:[#allocation7] sm:$0xff] %vm977, %v1417
    %v1422 = vcombine.low %v295, %v297
    %v1423 = vcombine.high %v295, %v297
    %v1425 = vunpack.c.l.s4 1966171168
    %v1426 = vunpack.c.0.s8 %v1425
    %v1427 = vlaneseq
    %v1428 = vshrl.u32 %v1427, 7
    %v1429 = vsub.s32 %v1426, %v1428
    %v1430 = vrot.slane %v1422, %v1429
    %v1432 = vunpack.c.l.s4 1966171168
    %v1433 = vunpack.c.0.s8 %v1432
    %v1434 = vlaneseq
    %v1435 = vshrl.u32 %v1434, 7
    %v1436 = vsub.s32 %v1433, %v1435
    %v1437 = vrot.slane %v1423, %v1436
    %v1438 = vcombine.high %v1430, %v1430
    %v1439 = vcombine.high %v1437, %v1437
    %v1441 = vunpack.c.l.s4 1966171168
    %v1442 = vunpack.c.0.s8 %v1441
    %v1443 = vlaneseq
    %v1444 = vshrl.u32 %v1443, 7
    %v1445 = vsub.s32 %v1442, %v1444
    %v1446 = vrot.slane %v1430, %v1445
    %v1448 = vunpack.c.l.s4 1966171168
    %v1449 = vunpack.c.0.s8 %v1448
    %v1450 = vlaneseq
    %v1451 = vshrl.u32 %v1450, 7
    %v1452 = vsub.s32 %v1449, %v1451
    %v1453 = vrot.slane %v1437, %v1452
    %v1455 = vunpack.c.l.s4 1966171168
    %v1456 = vunpack.c.0.s8 %v1455
    %v1457 = vlaneseq
    %v1458 = vshrl.u32 %v1457, 7
    %v1459 = vsub.s32 %v1456, %v1458
    %v1460 = vrot.slane %v1438, %v1459
    %v1462 = vunpack.c.l.s4 1966171168
    %v1463 = vunpack.c.0.s8 %v1462
    %v1464 = vlaneseq
    %v1465 = vshrl.u32 %v1464, 7
    %v1466 = vsub.s32 %v1463, %v1465
    %v1467 = vrot.slane %v1439, %v1466
    %v1468 = vcombine.high %v1446, %v1446
    %v1469 = vcombine.high %v1453, %v1453
    %v1470 = vcombine.high %v1460, %v1460
    %v1471 = vcombine.high %v1467, %v1467
    %v1472 = vlaneseq
    %v1473 = vshrl.u32 %v1472, 7
    %v1474 = vsub.s32 0, %v1473
    %v1475 = vrot.slane %v1446, %v1474
    %v1476 = vlaneseq
    %v1477 = vshrl.u32 %v1476, 7
    %v1478 = vsub.s32 1, %v1477
    %v1479 = vrot.slane %v1446, %v1478
    %v1480 = vlaneseq
    %v1481 = vshrl.u32 %v1480, 7
    %v1482 = vsub.s32 0, %v1481
    %v1483 = vrot.slane %v1460, %v1482
    %v1484 = vlaneseq
    %v1485 = vshrl.u32 %v1484, 7
    %v1486 = vsub.s32 1, %v1485
    %v1487 = vrot.slane %v1460, %v1486
    %v1488 = vlaneseq
    %v1489 = vshrl.u32 %v1488, 7
    %v1490 = vsub.s32 0, %v1489
    %v1491 = vrot.slane %v1468, %v1490
    %v1492 = vlaneseq
    %v1493 = vshrl.u32 %v1492, 7
    %v1494 = vsub.s32 1, %v1493
    %v1495 = vrot.slane %v1468, %v1494
    %v1496 = vlaneseq
    %v1497 = vshrl.u32 %v1496, 7
    %v1498 = vsub.s32 0, %v1497
    %v1499 = vrot.slane %v1470, %v1498
    %v1500 = vlaneseq
    %v1501 = vshrl.u32 %v1500, 7
    %v1502 = vsub.s32 1, %v1501
    %v1503 = vrot.slane %v1470, %v1502
    %v1504 = vlaneseq
    %v1505 = vshrl.u32 %v1504, 7
    %v1506 = vsub.s32 0, %v1505
    %v1507 = vrot.slane %v1453, %v1506
    %v1508 = vlaneseq
    %v1509 = vshrl.u32 %v1508, 7
    %v1510 = vsub.s32 1, %v1509
    %v1511 = vrot.slane %v1453, %v1510
    %v1512 = vlaneseq
    %v1513 = vshrl.u32 %v1512, 7
    %v1514 = vsub.s32 0, %v1513
    %v1515 = vrot.slane %v1467, %v1514
    %v1516 = vlaneseq
    %v1517 = vshrl.u32 %v1516, 7
    %v1518 = vsub.s32 1, %v1517
    %v1519 = vrot.slane %v1467, %v1518
    %v1520 = vlaneseq
    %v1521 = vshrl.u32 %v1520, 7
    %v1522 = vsub.s32 0, %v1521
    %v1523 = vrot.slane %v1469, %v1522
    %v1524 = vlaneseq
    %v1525 = vshrl.u32 %v1524, 7
    %v1526 = vsub.s32 1, %v1525
    %v1527 = vrot.slane %v1469, %v1526
    %v1528 = vlaneseq
    %v1529 = vshrl.u32 %v1528, 7
    %v1530 = vsub.s32 0, %v1529
    %v1531 = vrot.slane %v1471, %v1530
    %v1532 = vlaneseq
    %v1533 = vshrl.u32 %v1532, 7
    %v1534 = vsub.s32 1, %v1533
    %v1535 = vrot.slane %v1471, %v1534
    %v1552 = vadd.f32 %v1475, %v572
    %v1553 = vadd.f32 %v1479, %v574
    %v1554 = vadd.f32 %v1475, %v576
    %v1555 = vadd.f32 %v1479, %v578
    %v1556 = vadd.f32 %v1483, %v572
    %v1557 = vadd.f32 %v1487, %v574
    %v1558 = vadd.f32 %v1483, %v576
    %v1559 = vadd.f32 %v1487, %v578
    %v1560 = vadd.f32 %v1491, %v572
    %v1561 = vadd.f32 %v1495, %v574
    %v1562 = vadd.f32 %v1491, %v576
    %v1563 = vadd.f32 %v1495, %v578
    %v1564 = vadd.f32 %v1499, %v572
    %v1565 = vadd.f32 %v1503, %v574
    %v1566 = vadd.f32 %v1499, %v576
    %v1567 = vadd.f32 %v1503, %v578
    %v1568 = vadd.f32 %v1507, %v572
    %v1569 = vadd.f32 %v1511, %v574
    %v1570 = vadd.f32 %v1507, %v576
    %v1571 = vadd.f32 %v1511, %v578
    %v1572 = vadd.f32 %v1515, %v572
    %v1573 = vadd.f32 %v1519, %v574
    %v1574 = vadd.f32 %v1515, %v576
    %v1575 = vadd.f32 %v1519, %v578
    %v1576 = vadd.f32 %v1523, %v572
    %v1577 = vadd.f32 %v1527, %v574
    %v1578 = vadd.f32 %v1523, %v576
    %v1579 = vadd.f32 %v1527, %v578
    %v1580 = vadd.f32 %v1531, %v572
    %v1581 = vadd.f32 %v1535, %v574
    %v1582 = vadd.f32 %v1531, %v576
    %v1583 = vadd.f32 %v1535, %v578
    %v1584 = vmax.f32 %v1552, 0.0
    %v1585 = vmax.f32 %v1553, 0.0
    %v1586 = vmax.f32 %v1554, 0.0
    %v1587 = vmax.f32 %v1555, 0.0
    %v1588 = vmax.f32 %v1556, 0.0
    %v1589 = vmax.f32 %v1557, 0.0
    %v1590 = vmax.f32 %v1558, 0.0
    %v1591 = vmax.f32 %v1559, 0.0
    %v1592 = vmax.f32 %v1560, 0.0
    %v1593 = vmax.f32 %v1561, 0.0
    %v1594 = vmax.f32 %v1562, 0.0
    %v1595 = vmax.f32 %v1563, 0.0
    %v1596 = vmax.f32 %v1564, 0.0
    %v1597 = vmax.f32 %v1565, 0.0
    %v1598 = vmax.f32 %v1566, 0.0
    %v1599 = vmax.f32 %v1567, 0.0
    %v1600 = vmax.f32 %v1568, 0.0
    %v1601 = vmax.f32 %v1569, 0.0
    %v1602 = vmax.f32 %v1570, 0.0
    %v1603 = vmax.f32 %v1571, 0.0
    %v1604 = vmax.f32 %v1572, 0.0
    %v1605 = vmax.f32 %v1573, 0.0
    %v1606 = vmax.f32 %v1574, 0.0
    %v1607 = vmax.f32 %v1575, 0.0
    %v1608 = vmax.f32 %v1576, 0.0
    %v1609 = vmax.f32 %v1577, 0.0
    %v1610 = vmax.f32 %v1578, 0.0
    %v1611 = vmax.f32 %v1579, 0.0
    %v1612 = vmax.f32 %v1580, 0.0
    %v1613 = vmax.f32 %v1581, 0.0
    %v1614 = vmax.f32 %v1582, 0.0
    %v1615 = vmax.f32 %v1583, 0.0
    %v1616 = vmul.f32 %v1584, %v782
    %v1617 = vmul.f32 %v1586, %v782
    %v1618 = vmul.f32 %v1588, %v782
    %v1619 = vmul.f32 %v1590, %v782
    %v1620 = vmul.f32 %v1592, %v782
    %v1621 = vmul.f32 %v1594, %v782
    %v1622 = vmul.f32 %v1596, %v782
    %v1623 = vmul.f32 %v1598, %v782
    %v1624 = vmul.f32 %v1600, %v782
    %v1625 = vmul.f32 %v1602, %v782
    %v1626 = vmul.f32 %v1604, %v782
    %v1627 = vmul.f32 %v1606, %v782
    %v1628 = vmul.f32 %v1608, %v782
    %v1629 = vmul.f32 %v1610, %v782
    %v1630 = vmul.f32 %v1612, %v782
    %v1631 = vmul.f32 %v1614, %v782
    %v1632 = vmul.f32 %v1585, %v804
    %v1633 = vmul.f32 %v1587, %v804
    %v1634 = vmul.f32 %v1589, %v804
    %v1635 = vmul.f32 %v1591, %v804
    %v1636 = vmul.f32 %v1593, %v804
    %v1637 = vmul.f32 %v1595, %v804
    %v1638 = vmul.f32 %v1597, %v804
    %v1639 = vmul.f32 %v1599, %v804
    %v1640 = vmul.f32 %v1601, %v804
    %v1641 = vmul.f32 %v1603, %v804
    %v1642 = vmul.f32 %v1605, %v804
    %v1643 = vmul.f32 %v1607, %v804
    %v1644 = vmul.f32 %v1609, %v804
    %v1645 = vmul.f32 %v1611, %v804
    %v1646 = vmul.f32 %v1613, %v804
    %v1647 = vmul.f32 %v1615, %v804
    %v1648 = vadd.f32 %v1616, %v1632
    %v1649 = vadd.f32 %v1617, %v1633
    %v1650 = vadd.f32 %v1618, %v1634
    %v1651 = vadd.f32 %v1619, %v1635
    %v1652 = vadd.f32 %v1620, %v1636
    %v1653 = vadd.f32 %v1621, %v1637
    %v1654 = vadd.f32 %v1622, %v1638
    %v1655 = vadd.f32 %v1623, %v1639
    %v1656 = vadd.f32 %v1624, %v1640
    %v1657 = vadd.f32 %v1625, %v1641
    %v1658 = vadd.f32 %v1626, %v1642
    %v1659 = vadd.f32 %v1627, %v1643
    %v1660 = vadd.f32 %v1628, %v1644
    %v1661 = vadd.f32 %v1629, %v1645
    %v1662 = vadd.f32 %v1630, %v1646
    %v1663 = vadd.f32 %v1631, %v1647
    %1664 = vadd.xlane.f32.xlu0 %v1648
    %v1665 = vpop.xlane.xlu0 %1664
    %1666 = vadd.xlane.f32.xlu0 %v1649
    %v1667 = vpop.xlane.xlu0 %1666
    %1668 = vadd.xlane.f32.xlu0 %v1650
    %v1669 = vpop.xlane.xlu0 %1668
    %1670 = vadd.xlane.f32.xlu0 %v1651
    %v1671 = vpop.xlane.xlu0 %1670
    %1672 = vadd.xlane.f32.xlu0 %v1652
    %v1673 = vpop.xlane.xlu0 %1672
    %1674 = vadd.xlane.f32.xlu0 %v1653
    %v1675 = vpop.xlane.xlu0 %1674
    %1676 = vadd.xlane.f32.xlu0 %v1654
    %v1677 = vpop.xlane.xlu0 %1676
    %1678 = vadd.xlane.f32.xlu0 %v1655
    %v1679 = vpop.xlane.xlu0 %1678
    %1680 = vadd.xlane.f32.xlu0 %v1656
    %v1681 = vpop.xlane.xlu0 %1680
    %1682 = vadd.xlane.f32.xlu0 %v1657
    %v1683 = vpop.xlane.xlu0 %1682
    %1684 = vadd.xlane.f32.xlu0 %v1658
    %v1685 = vpop.xlane.xlu0 %1684
    %1686 = vadd.xlane.f32.xlu0 %v1659
    %v1687 = vpop.xlane.xlu0 %1686
    %1688 = vadd.xlane.f32.xlu0 %v1660
    %v1689 = vpop.xlane.xlu0 %1688
    %1690 = vadd.xlane.f32.xlu0 %v1661
    %v1691 = vpop.xlane.xlu0 %1690
    %1692 = vadd.xlane.f32.xlu0 %v1662
    %v1693 = vpop.xlane.xlu0 %1692
    %1694 = vadd.xlane.f32.xlu0 %v1663
    %v1695 = vpop.xlane.xlu0 %1694
    %v1712 = vlaneseq
    %v1713 = vshrl.u32 %v1712, 7
    %v1714 = vsub.s32 %v887, %v1713
    %v1715 = vrot.slane %v1665, %v1714
    %v1716 = vlaneseq
    %v1717 = vshrl.u32 %v1716, 7
    %v1718 = vsub.s32 %v892, %v1717
    %v1719 = vrot.slane %v1667, %v1718
    %v1720 = vsel %vm897, %v1719, %v1715
    %v1721 = vlaneseq
    %v1722 = vshrl.u32 %v1721, 7
    %v1723 = vsub.s32 %v887, %v1722
    %v1724 = vrot.slane %v1669, %v1723
    %v1725 = vlaneseq
    %v1726 = vshrl.u32 %v1725, 7
    %v1727 = vsub.s32 %v892, %v1726
    %v1728 = vrot.slane %v1671, %v1727
    %v1729 = vsel %vm897, %v1728, %v1724
    %v1730 = vlaneseq
    %v1731 = vshrl.u32 %v1730, 7
    %v1732 = vsub.s32 %v887, %v1731
    %v1733 = vrot.slane %v1673, %v1732
    %v1734 = vlaneseq
    %v1735 = vshrl.u32 %v1734, 7
    %v1736 = vsub.s32 %v892, %v1735
    %v1737 = vrot.slane %v1675, %v1736
    %v1738 = vsel %vm897, %v1737, %v1733
    %v1739 = vlaneseq
    %v1740 = vshrl.u32 %v1739, 7
    %v1741 = vsub.s32 %v887, %v1740
    %v1742 = vrot.slane %v1677, %v1741
    %v1743 = vlaneseq
    %v1744 = vshrl.u32 %v1743, 7
    %v1745 = vsub.s32 %v892, %v1744
    %v1746 = vrot.slane %v1679, %v1745
    %v1747 = vsel %vm897, %v1746, %v1742
    %v1748 = vlaneseq
    %v1749 = vshrl.u32 %v1748, 7
    %v1750 = vsub.s32 %v887, %v1749
    %v1751 = vrot.slane %v1681, %v1750
    %v1752 = vlaneseq
    %v1753 = vshrl.u32 %v1752, 7
    %v1754 = vsub.s32 %v892, %v1753
    %v1755 = vrot.slane %v1683, %v1754
    %v1756 = vsel %vm897, %v1755, %v1751
    %v1757 = vlaneseq
    %v1758 = vshrl.u32 %v1757, 7
    %v1759 = vsub.s32 %v887, %v1758
    %v1760 = vrot.slane %v1685, %v1759
    %v1761 = vlaneseq
    %v1762 = vshrl.u32 %v1761, 7
    %v1763 = vsub.s32 %v892, %v1762
    %v1764 = vrot.slane %v1687, %v1763
    %v1765 = vsel %vm897, %v1764, %v1760
    %v1766 = vlaneseq
    %v1767 = vshrl.u32 %v1766, 7
    %v1768 = vsub.s32 %v887, %v1767
    %v1769 = vrot.slane %v1689, %v1768
    %v1770 = vlaneseq
    %v1771 = vshrl.u32 %v1770, 7
    %v1772 = vsub.s32 %v892, %v1771
    %v1773 = vrot.slane %v1691, %v1772
    %v1774 = vsel %vm897, %v1773, %v1769
    %v1775 = vlaneseq
    %v1776 = vshrl.u32 %v1775, 7
    %v1777 = vsub.s32 %v887, %v1776
    %v1778 = vrot.slane %v1693, %v1777
    %v1779 = vlaneseq
    %v1780 = vshrl.u32 %v1779, 7
    %v1781 = vsub.s32 %v892, %v1780
    %v1782 = vrot.slane %v1695, %v1781
    %v1783 = vsel %vm897, %v1782, %v1778
    %v1784 = vsel %vm962, %v1729, %v1720
    %v1785 = vsel %vm964, %v1738, %v1784
    %v1786 = vsel %vm966, %v1747, %v1785
    %v1787 = vsel %vm968, %v1756, %v1786
    %v1788 = vsel %vm970, %v1765, %v1787
    %v1789 = vsel %vm972, %v1774, %v1788
    %v1790 = vsel %vm974, %v1783, %v1789
    %v1792 = vsel %vm977, %v1790, -inf
    %1793 = vmax.xlane.f32.xlu0 %v1792
    %v1794 = vpop.xlane.xlu0 %1793
    %v1796 = vlaneseq
    %v1797 = vshrl.u32 %v1796, 7
    %v1798 = vsub.s32 0, %v1797
    %v1799 = vrot.slane %v1794, %v1798
    %v1800 = vlaneseq
    %v1801 = vshrl.u32 %v1800, 7
    %v1802 = vsub.s32 1, %v1801
    %v1803 = vrot.slane %v1794, %v1802
    %v1804 = vlaneseq
    %v1805 = vshrl.u32 %v1804, 7
    %v1806 = vsub.s32 2, %v1805
    %v1807 = vrot.slane %v1794, %v1806
    %v1808 = vlaneseq
    %v1809 = vshrl.u32 %v1808, 7
    %v1810 = vsub.s32 3, %v1809
    %v1811 = vrot.slane %v1794, %v1810
    %v1812 = vlaneseq
    %v1813 = vshrl.u32 %v1812, 7
    %v1814 = vsub.s32 4, %v1813
    %v1815 = vrot.slane %v1794, %v1814
    %v1816 = vlaneseq
    %v1817 = vshrl.u32 %v1816, 7
    %v1818 = vsub.s32 5, %v1817
    %v1819 = vrot.slane %v1794, %v1818
    %v1820 = vlaneseq
    %v1821 = vshrl.u32 %v1820, 7
    %v1822 = vsub.s32 6, %v1821
    %v1823 = vrot.slane %v1794, %v1822
    %v1824 = vlaneseq
    %v1825 = vshrl.u32 %v1824, 7
    %v1826 = vsub.s32 7, %v1825
    %v1827 = vrot.slane %v1794, %v1826
    %v1836 = vsub.f32 %v1665, %v1799
    %v1837 = vsub.f32 %v1667, %v1799
    %v1838 = vsub.f32 %v1669, %v1803
    %v1839 = vsub.f32 %v1671, %v1803
    %v1840 = vsub.f32 %v1673, %v1807
    %v1841 = vsub.f32 %v1675, %v1807
    %v1842 = vsub.f32 %v1677, %v1811
    %v1843 = vsub.f32 %v1679, %v1811
    %v1844 = vsub.f32 %v1681, %v1815
    %v1845 = vsub.f32 %v1683, %v1815
    %v1846 = vsub.f32 %v1685, %v1819
    %v1847 = vsub.f32 %v1687, %v1819
    %v1848 = vsub.f32 %v1689, %v1823
    %v1849 = vsub.f32 %v1691, %v1823
    %v1850 = vsub.f32 %v1693, %v1827
    %v1851 = vsub.f32 %v1695, %v1827
    %v1852 = vmul.f32 %v1836, 1.442695
    %v1853 = vpow.pop %v1852
    %v1854 = vmul.f32 %v1837, 1.442695
    %v1855 = vpow.pop %v1854
    %v1856 = vmul.f32 %v1838, 1.442695
    %v1857 = vpow.pop %v1856
    %v1858 = vmul.f32 %v1839, 1.442695
    %v1859 = vpow.pop %v1858
    %v1860 = vmul.f32 %v1840, 1.442695
    %v1861 = vpow.pop %v1860
    %v1862 = vmul.f32 %v1841, 1.442695
    %v1863 = vpow.pop %v1862
    %v1864 = vmul.f32 %v1842, 1.442695
    %v1865 = vpow.pop %v1864
    %v1866 = vmul.f32 %v1843, 1.442695
    %v1867 = vpow.pop %v1866
    %v1868 = vmul.f32 %v1844, 1.442695
    %v1869 = vpow.pop %v1868
    %v1870 = vmul.f32 %v1845, 1.442695
    %v1871 = vpow.pop %v1870
    %v1872 = vmul.f32 %v1846, 1.442695
    %v1873 = vpow.pop %v1872
    %v1874 = vmul.f32 %v1847, 1.442695
    %v1875 = vpow.pop %v1874
    %v1876 = vmul.f32 %v1848, 1.442695
    %v1877 = vpow.pop %v1876
    %v1878 = vmul.f32 %v1849, 1.442695
    %v1879 = vpow.pop %v1878
    %v1880 = vmul.f32 %v1850, 1.442695
    %v1881 = vpow.pop %v1880
    %v1882 = vmul.f32 %v1851, 1.442695
    %v1883 = vpow.pop %v1882
    %1900 = vset.pattern.permute.xlu0 0
    %1901 = vperm.xlu0 %1900, %v1853
    %v1902 = vpop.permute.xlu0 %1901
    %1903 = vset.pattern.permute.xlu0 0
    %1904 = vperm.xlu0 %1903, %v1855
    %v1905 = vpop.permute.xlu0 %1904
    %1906 = vset.pattern.permute.xlu0 0
    %1907 = vperm.xlu0 %1906, %v1857
    %v1908 = vpop.permute.xlu0 %1907
    %1909 = vset.pattern.permute.xlu0 0
    %1910 = vperm.xlu0 %1909, %v1859
    %v1911 = vpop.permute.xlu0 %1910
    %1912 = vset.pattern.permute.xlu0 0
    %1913 = vperm.xlu0 %1912, %v1861
    %v1914 = vpop.permute.xlu0 %1913
    %1915 = vset.pattern.permute.xlu0 0
    %1916 = vperm.xlu0 %1915, %v1863
    %v1917 = vpop.permute.xlu0 %1916
    %1918 = vset.pattern.permute.xlu0 0
    %1919 = vperm.xlu0 %1918, %v1865
    %v1920 = vpop.permute.xlu0 %1919
    %1921 = vset.pattern.permute.xlu0 0
    %1922 = vperm.xlu0 %1921, %v1867
    %v1923 = vpop.permute.xlu0 %1922
    %1924 = vset.pattern.permute.xlu0 0
    %1925 = vperm.xlu0 %1924, %v1869
    %v1926 = vpop.permute.xlu0 %1925
    %1927 = vset.pattern.permute.xlu0 0
    %1928 = vperm.xlu0 %1927, %v1871
    %v1929 = vpop.permute.xlu0 %1928
    %1930 = vset.pattern.permute.xlu0 0
    %1931 = vperm.xlu0 %1930, %v1873
    %v1932 = vpop.permute.xlu0 %1931
    %1933 = vset.pattern.permute.xlu0 0
    %1934 = vperm.xlu0 %1933, %v1875
    %v1935 = vpop.permute.xlu0 %1934
    %1936 = vset.pattern.permute.xlu0 0
    %1937 = vperm.xlu0 %1936, %v1877
    %v1938 = vpop.permute.xlu0 %1937
    %1939 = vset.pattern.permute.xlu0 0
    %1940 = vperm.xlu0 %1939, %v1879
    %v1941 = vpop.permute.xlu0 %1940
    %1942 = vset.pattern.permute.xlu0 0
    %1943 = vperm.xlu0 %1942, %v1881
    %v1944 = vpop.permute.xlu0 %1943
    %1945 = vset.pattern.permute.xlu0 0
    %1946 = vperm.xlu0 %1945, %v1883
    %v1947 = vpop.permute.xlu0 %1946
    %v1948 = vlaneseq
    %v1949 = vshrl.u32 %v1948, 7
    %v1950 = vsub.s32 %v887, %v1949
    %v1951 = vrot.slane %v1902, %v1950
    %v1952 = vlaneseq
    %v1953 = vshrl.u32 %v1952, 7
    %v1954 = vsub.s32 %v892, %v1953
    %v1955 = vrot.slane %v1905, %v1954
    %v1956 = vsel %vm897, %v1955, %v1951
    %v1957 = vlaneseq
    %v1958 = vshrl.u32 %v1957, 7
    %v1959 = vsub.s32 %v887, %v1958
    %v1960 = vrot.slane %v1908, %v1959
    %v1961 = vlaneseq
    %v1962 = vshrl.u32 %v1961, 7
    %v1963 = vsub.s32 %v892, %v1962
    %v1964 = vrot.slane %v1911, %v1963
    %v1965 = vsel %vm897, %v1964, %v1960
    %v1966 = vlaneseq
    %v1967 = vshrl.u32 %v1966, 7
    %v1968 = vsub.s32 %v887, %v1967
    %v1969 = vrot.slane %v1914, %v1968
    %v1970 = vlaneseq
    %v1971 = vshrl.u32 %v1970, 7
    %v1972 = vsub.s32 %v892, %v1971
    %v1973 = vrot.slane %v1917, %v1972
    %v1974 = vsel %vm897, %v1973, %v1969
    %v1975 = vlaneseq
    %v1976 = vshrl.u32 %v1975, 7
    %v1977 = vsub.s32 %v887, %v1976
    %v1978 = vrot.slane %v1920, %v1977
    %v1979 = vlaneseq
    %v1980 = vshrl.u32 %v1979, 7
    %v1981 = vsub.s32 %v892, %v1980
    %v1982 = vrot.slane %v1923, %v1981
    %v1983 = vsel %vm897, %v1982, %v1978
    %v1984 = vlaneseq
    %v1985 = vshrl.u32 %v1984, 7
    %v1986 = vsub.s32 %v887, %v1985
    %v1987 = vrot.slane %v1926, %v1986
    %v1988 = vlaneseq
    %v1989 = vshrl.u32 %v1988, 7
    %v1990 = vsub.s32 %v892, %v1989
    %v1991 = vrot.slane %v1929, %v1990
    %v1992 = vsel %vm897, %v1991, %v1987
    %v1993 = vlaneseq
    %v1994 = vshrl.u32 %v1993, 7
    %v1995 = vsub.s32 %v887, %v1994
    %v1996 = vrot.slane %v1932, %v1995
    %v1997 = vlaneseq
    %v1998 = vshrl.u32 %v1997, 7
    %v1999 = vsub.s32 %v892, %v1998
    %v2000 = vrot.slane %v1935, %v1999
    %v2001 = vsel %vm897, %v2000, %v1996
    %v2002 = vlaneseq
    %v2003 = vshrl.u32 %v2002, 7
    %v2004 = vsub.s32 %v887, %v2003
    %v2005 = vrot.slane %v1938, %v2004
    %v2006 = vlaneseq
    %v2007 = vshrl.u32 %v2006, 7
    %v2008 = vsub.s32 %v892, %v2007
    %v2009 = vrot.slane %v1941, %v2008
    %v2010 = vsel %vm897, %v2009, %v2005
    %v2011 = vlaneseq
    %v2012 = vshrl.u32 %v2011, 7
    %v2013 = vsub.s32 %v887, %v2012
    %v2014 = vrot.slane %v1944, %v2013
    %v2015 = vlaneseq
    %v2016 = vshrl.u32 %v2015, 7
    %v2017 = vsub.s32 %v892, %v2016
    %v2018 = vrot.slane %v1947, %v2017
    %v2019 = vsel %vm897, %v2018, %v2014
    %v2020 = vsel %vm962, %v1965, %v1956
    %v2021 = vsel %vm964, %v1974, %v2020
    %v2022 = vsel %vm966, %v1983, %v2021
    %v2023 = vsel %vm968, %v1992, %v2022
    %v2024 = vsel %vm970, %v2001, %v2023
    %v2025 = vsel %vm972, %v2010, %v2024
    %v2026 = vsel %vm974, %v2019, %v2025
    %v2028 = vsel %vm977, %v2026, 0.0
    %2029 = vadd.xlane.f32.xlu0 %v2028
    %v2030 = vpop.xlane.xlu0 %2029
    %v2031 = vrcp.pop %v2030
    %v2033 = vlaneseq
    %v2034 = vshrl.u32 %v2033, 7
    %v2035 = vsub.s32 0, %v2034
    %v2036 = vrot.slane %v2031, %v2035
    %v2037 = vlaneseq
    %v2038 = vshrl.u32 %v2037, 7
    %v2039 = vsub.s32 1, %v2038
    %v2040 = vrot.slane %v2031, %v2039
    %v2041 = vlaneseq
    %v2042 = vshrl.u32 %v2041, 7
    %v2043 = vsub.s32 2, %v2042
    %v2044 = vrot.slane %v2031, %v2043
    %v2045 = vlaneseq
    %v2046 = vshrl.u32 %v2045, 7
    %v2047 = vsub.s32 3, %v2046
    %v2048 = vrot.slane %v2031, %v2047
    %v2049 = vlaneseq
    %v2050 = vshrl.u32 %v2049, 7
    %v2051 = vsub.s32 4, %v2050
    %v2052 = vrot.slane %v2031, %v2051
    %v2053 = vlaneseq
    %v2054 = vshrl.u32 %v2053, 7
    %v2055 = vsub.s32 5, %v2054
    %v2056 = vrot.slane %v2031, %v2055
    %v2057 = vlaneseq
    %v2058 = vshrl.u32 %v2057, 7
    %v2059 = vsub.s32 6, %v2058
    %v2060 = vrot.slane %v2031, %v2059
    %v2061 = vlaneseq
    %v2062 = vshrl.u32 %v2061, 7
    %v2063 = vsub.s32 7, %v2062
    %v2064 = vrot.slane %v2031, %v2063
    %v2073 = vmul.f32 %v1853, %v2036
    %v2074 = vmul.f32 %v1855, %v2036
    %v2075 = vmul.f32 %v1857, %v2040
    %v2076 = vmul.f32 %v1859, %v2040
    %v2077 = vmul.f32 %v1861, %v2044
    %v2078 = vmul.f32 %v1863, %v2044
    %v2079 = vmul.f32 %v1865, %v2048
    %v2080 = vmul.f32 %v1867, %v2048
    %v2081 = vmul.f32 %v1869, %v2052
    %v2082 = vmul.f32 %v1871, %v2052
    %v2083 = vmul.f32 %v1873, %v2056
    %v2084 = vmul.f32 %v1875, %v2056
    %v2085 = vmul.f32 %v1877, %v2060
    %v2086 = vmul.f32 %v1879, %v2060
    %v2087 = vmul.f32 %v1881, %v2064
    %v2088 = vmul.f32 %v1883, %v2064
    %2105 = vset.pattern.permute.xlu0 0
    %2106 = vperm.xlu0 %2105, %v2073
    %v2107 = vpop.permute.xlu0 %2106
    %2108 = vset.pattern.permute.xlu0 0
    %2109 = vperm.xlu0 %2108, %v2074
    %v2110 = vpop.permute.xlu0 %2109
    %2111 = vset.pattern.permute.xlu0 0
    %2112 = vperm.xlu0 %2111, %v2075
    %v2113 = vpop.permute.xlu0 %2112
    %2114 = vset.pattern.permute.xlu0 0
    %2115 = vperm.xlu0 %2114, %v2076
    %v2116 = vpop.permute.xlu0 %2115
    %2117 = vset.pattern.permute.xlu0 0
    %2118 = vperm.xlu0 %2117, %v2077
    %v2119 = vpop.permute.xlu0 %2118
    %2120 = vset.pattern.permute.xlu0 0
    %2121 = vperm.xlu0 %2120, %v2078
    %v2122 = vpop.permute.xlu0 %2121
    %2123 = vset.pattern.permute.xlu0 0
    %2124 = vperm.xlu0 %2123, %v2079
    %v2125 = vpop.permute.xlu0 %2124
    %2126 = vset.pattern.permute.xlu0 0
    %2127 = vperm.xlu0 %2126, %v2080
    %v2128 = vpop.permute.xlu0 %2127
    %2129 = vset.pattern.permute.xlu0 0
    %2130 = vperm.xlu0 %2129, %v2081
    %v2131 = vpop.permute.xlu0 %2130
    %2132 = vset.pattern.permute.xlu0 0
    %2133 = vperm.xlu0 %2132, %v2082
    %v2134 = vpop.permute.xlu0 %2133
    %2135 = vset.pattern.permute.xlu0 0
    %2136 = vperm.xlu0 %2135, %v2083
    %v2137 = vpop.permute.xlu0 %2136
    %2138 = vset.pattern.permute.xlu0 0
    %2139 = vperm.xlu0 %2138, %v2084
    %v2140 = vpop.permute.xlu0 %2139
    %2141 = vset.pattern.permute.xlu0 0
    %2142 = vperm.xlu0 %2141, %v2085
    %v2143 = vpop.permute.xlu0 %2142
    %2144 = vset.pattern.permute.xlu0 0
    %2145 = vperm.xlu0 %2144, %v2086
    %v2146 = vpop.permute.xlu0 %2145
    %2147 = vset.pattern.permute.xlu0 0
    %2148 = vperm.xlu0 %2147, %v2087
    %v2149 = vpop.permute.xlu0 %2148
    %2150 = vset.pattern.permute.xlu0 0
    %2151 = vperm.xlu0 %2150, %v2088
    %v2152 = vpop.permute.xlu0 %2151
    %v2153 = vlaneseq
    %v2154 = vshrl.u32 %v2153, 7
    %v2155 = vsub.s32 %v887, %v2154
    %v2156 = vrot.slane %v2107, %v2155
    %v2157 = vlaneseq
    %v2158 = vshrl.u32 %v2157, 7
    %v2159 = vsub.s32 %v892, %v2158
    %v2160 = vrot.slane %v2110, %v2159
    %v2161 = vsel %vm897, %v2160, %v2156
    %v2162 = vlaneseq
    %v2163 = vshrl.u32 %v2162, 7
    %v2164 = vsub.s32 %v887, %v2163
    %v2165 = vrot.slane %v2113, %v2164
    %v2166 = vlaneseq
    %v2167 = vshrl.u32 %v2166, 7
    %v2168 = vsub.s32 %v892, %v2167
    %v2169 = vrot.slane %v2116, %v2168
    %v2170 = vsel %vm897, %v2169, %v2165
    %v2171 = vlaneseq
    %v2172 = vshrl.u32 %v2171, 7
    %v2173 = vsub.s32 %v887, %v2172
    %v2174 = vrot.slane %v2119, %v2173
    %v2175 = vlaneseq
    %v2176 = vshrl.u32 %v2175, 7
    %v2177 = vsub.s32 %v892, %v2176
    %v2178 = vrot.slane %v2122, %v2177
    %v2179 = vsel %vm897, %v2178, %v2174
    %v2180 = vlaneseq
    %v2181 = vshrl.u32 %v2180, 7
    %v2182 = vsub.s32 %v887, %v2181
    %v2183 = vrot.slane %v2125, %v2182
    %v2184 = vlaneseq
    %v2185 = vshrl.u32 %v2184, 7
    %v2186 = vsub.s32 %v892, %v2185
    %v2187 = vrot.slane %v2128, %v2186
    %v2188 = vsel %vm897, %v2187, %v2183
    %v2189 = vlaneseq
    %v2190 = vshrl.u32 %v2189, 7
    %v2191 = vsub.s32 %v887, %v2190
    %v2192 = vrot.slane %v2131, %v2191
    %v2193 = vlaneseq
    %v2194 = vshrl.u32 %v2193, 7
    %v2195 = vsub.s32 %v892, %v2194
    %v2196 = vrot.slane %v2134, %v2195
    %v2197 = vsel %vm897, %v2196, %v2192
    %v2198 = vlaneseq
    %v2199 = vshrl.u32 %v2198, 7
    %v2200 = vsub.s32 %v887, %v2199
    %v2201 = vrot.slane %v2137, %v2200
    %v2202 = vlaneseq
    %v2203 = vshrl.u32 %v2202, 7
    %v2204 = vsub.s32 %v892, %v2203
    %v2205 = vrot.slane %v2140, %v2204
    %v2206 = vsel %vm897, %v2205, %v2201
    %v2207 = vlaneseq
    %v2208 = vshrl.u32 %v2207, 7
    %v2209 = vsub.s32 %v887, %v2208
    %v2210 = vrot.slane %v2143, %v2209
    %v2211 = vlaneseq
    %v2212 = vshrl.u32 %v2211, 7
    %v2213 = vsub.s32 %v892, %v2212
    %v2214 = vrot.slane %v2146, %v2213
    %v2215 = vsel %vm897, %v2214, %v2210
    %v2216 = vlaneseq
    %v2217 = vshrl.u32 %v2216, 7
    %v2218 = vsub.s32 %v887, %v2217
    %v2219 = vrot.slane %v2149, %v2218
    %v2220 = vlaneseq
    %v2221 = vshrl.u32 %v2220, 7
    %v2222 = vsub.s32 %v892, %v2221
    %v2223 = vrot.slane %v2152, %v2222
    %v2224 = vsel %vm897, %v2223, %v2219
    %v2225 = vsel %vm962, %v2170, %v2161
    %v2226 = vsel %vm964, %v2179, %v2225
    %v2227 = vsel %vm966, %v2188, %v2226
    %v2228 = vsel %vm968, %v2197, %v2227
    %v2229 = vsel %vm970, %v2206, %v2228
    %v2230 = vsel %vm972, %v2215, %v2229
    %v2231 = vsel %vm974, %v2224, %v2230
    %2233 = vst.msk [vmem:[#allocation7 + $0x8] sm:$0xff] %vm977, %v2231
    // Predicated region
    $region34: #{attention_net.1} parent=1 // pred_check
      _
    $region35: #{attention_net.1} parent=1 // pred_check_branch
      %2235 = sbr.rel (0) target = $region37
    $region36: #{attention_net.1} parent=1 // pred_region
      %s2237 = ssub.s32 256, 256
      %2238 = vsyncadd [#allocation4], %s2237
      %s2239 = sshll.u32 [#allocation7], 4
      %s2240 = int_to_ptr.vmem [resolvable:$true] %s2239
      %2245 = dma.vmem_to_hbm [thread:$0]  %s2240, 256, %s6, [#allocation4], 128, 128, 8
    $region37: #{attention_net.1} parent=1 // pred_fallthru
      _
    // Predicated region
    $region38: #{attention_net.1} parent=1 // pred_check
      _
    $region39: #{attention_net.1} parent=1 // pred_check_branch
      %2247 = sbr.rel (0) target = $region41
    $region40: #{attention_net.1} parent=1 // pred_region
      %2248 = dma.done [#allocation4], 256
    $region41: #{attention_net.1} parent=1 // pred_fallthru
      _
    %2249 = vsyncpa [#allocation3], 1
    %2250 = vsyncpa [#allocation6], 1
    %2251 = vsyncpa [#allocation4], 1

</llo_original>
